<compile_context>
chip_gen: v7x
topology: tpu7x:2x2x1
jax: 0.10.0
libtpu: 0.0.40
codegen_flags: <defaults>
</compile_context>

<pallas_src>
import jax
import jax.numpy as jnp
from jax.experimental import pallas as pl
from jax.experimental.pallas import tpu as pltpu

_HIGH = jax.lax.Precision.HIGHEST


def _moe_adaptor_kernel(x_ref, wgate_ref, wstk_ref, sel_ref, bproj_ref,
                        red_ref, out_ref):
    # x_ref:     (bm, D_in)        current row tile (block of whole batches)
    # wgate_ref: (D_in, E)
    # wstk_ref:  (D_in, E*D_out)   experts stacked along the lane axis
    # sel_ref:   (E, E*D_out)      0/1 gate-broadcast matrix
    # bproj_ref: (bm, E*D_out)     precomputed (b_e @ W_e), grid invariant
    # red_ref:   (E*D_out, D_out)  0/1 expert-reduce matrix
    # out_ref:   (bm, D_out)
    x = x_ref[...]

    # --- gating: softmax(x @ w_gate), exact f32 math ---
    logits = jnp.dot(x, wgate_ref[...],
                     preferred_element_type=jnp.float32, precision=_HIGH)
    m = jnp.max(logits, axis=-1, keepdims=True)
    p = jnp.exp(logits - m)
    gates = p / jnp.sum(p, axis=-1, keepdims=True)

    # --- all experts in one lane-dense matmul, bias projection subtracted ---
    expert_all = jnp.dot(x, wstk_ref[...],
                         preferred_element_type=jnp.float32, precision=_HIGH)
    expert_all = expert_all - bproj_ref[...]                     # (bm, E*Dout)

    # --- gate weighting + reduce over experts, kept lane dense ---
    # gate_b[m, e*Dout + d] = gates[m, e]
    gate_b = jnp.dot(gates, sel_ref[...],
                     preferred_element_type=jnp.float32, precision=_HIGH)
    weighted = gate_b * expert_all                               # (bm, E*Dout)
    # out[m, d] = sum_e weighted[m, e*Dout + d]
    out = jnp.dot(weighted, red_ref[...],
                  preferred_element_type=jnp.float32, precision=_HIGH)
    out_ref[...] = out.astype(out_ref.dtype)


def moe_adaptor_forward(x, w_gate, expert_bias, expert_w, block_batches=None):
    """x: (B, S, D_in); w_gate: (D_in, E); expert_bias: (E, S, D_in);
    expert_w: (E, D_in, D_out).  Returns (B, S, D_out)."""
    B, S, D_in = x.shape
    E, _, D_out = expert_w.shape
    M = B * S

    # Collapse (B, S) into a single row axis.
    xm = x.reshape(M, D_in)

    # Stack experts along the output (lane) axis: column block e is W_e.
    w_stacked = jnp.transpose(expert_w, (1, 0, 2)).reshape(D_in, E * D_out)

    # Batch-invariant bias projection (b_e @ W_e), stacked the same way.
    bias_proj_s = jnp.einsum("esd,edo->seo", expert_bias, expert_w,
                             precision=_HIGH).reshape(S, E * D_out)

    # Choose how many whole batches each grid step processes (rows per step
    # must be a multiple of 8 or cover the whole collapsed axis).
    if block_batches is None:
        block_batches = max(1, min(B, max(1, 256 // S)))
        while B % block_batches != 0:
            block_batches -= 1
    assert B % block_batches == 0
    block_m = block_batches * S
    if block_m % 8 != 0 and block_m != M:
        block_batches, block_m = B, M      # fallback: single grid step
    assert block_m % 8 == 0 or block_m == M

    # Bias projection replicated only over the batches inside one block
    # (grid-invariant operand -> fetched once, no full-B duplication in HBM).
    bias_proj = jnp.tile(bias_proj_s, (block_batches, 1))        # (block_m, E*Dout)

    # Constant 0/1 matrices for the lane-dense gate broadcast / expert reduce.
    e_ids = jnp.arange(E * D_out, dtype=jnp.int32) // D_out
    sel = (jnp.arange(E, dtype=jnp.int32)[:, None] == e_ids[None, :]
           ).astype(jnp.float32)                                 # (E, E*Dout)
    d_ids = jnp.arange(E * D_out, dtype=jnp.int32) % D_out
    red = (d_ids[:, None] == jnp.arange(D_out, dtype=jnp.int32)[None, :]
           ).astype(jnp.float32)                                 # (E*Dout, Dout)

    grid = (B // block_batches,)

    out2d = pl.pallas_call(
        _moe_adaptor_kernel,
        out_shape=jax.ShapeDtypeStruct((M, D_out), x.dtype),
        grid=grid,
        in_specs=[
            pl.BlockSpec((block_m, D_in), lambda i: (i, 0)),       # x rows
            pl.BlockSpec((D_in, E), lambda i: (0, 0)),             # w_gate
            pl.BlockSpec((D_in, E * D_out), lambda i: (0, 0)),     # stacked W
            pl.BlockSpec((E, E * D_out), lambda i: (0, 0)),        # sel
            pl.BlockSpec((block_m, E * D_out), lambda i: (0, 0)),  # bias proj
            pl.BlockSpec((E * D_out, D_out), lambda i: (0, 0)),    # red
        ],
        out_specs=pl.BlockSpec((block_m, D_out), lambda i: (i, 0)),
        compiler_params=pltpu.CompilerParams(
            dimension_semantics=("parallel",)),
    )(xm, w_gate, w_stacked, sel, bias_proj, red)

    return out2d.reshape(B, S, D_out)


def moe_adaptor_reference(x, w_gate, expert_bias, expert_w):
    """Plain-JAX reference mirroring the PyTorch eval forward."""
    logits = jnp.einsum("bsd,de->bse", x, w_gate, precision=_HIGH)
    gates = jax.nn.softmax(logits, axis=-1)                       # (B,S,E)
    xe = x[:, None, :, :] - expert_bias[None, :, :, :]            # (B,E,S,Din)
    eo = jnp.einsum("besd,edo->beso", xe, expert_w, precision=_HIGH)
    return jnp.einsum("bse,beso->bso", gates, eo, precision=_HIGH)


if __name__ == "__main__":
    # Small, module-consistent shapes:
    #   n_exps=4, layers=[32, 32], max_seq_length=8, batch=2
    B, S, D_in, D_out, E = 2, 8, 32, 32, 4

    key = jax.random.PRNGKey(0)
    kx, kg, kb, kw = jax.random.split(key, 4)

    x = jax.random.normal(kx, (B, S, D_in), dtype=jnp.float32)
    # PyTorch inits w_gate/bias to zeros and Linear weights ~ N(0, 0.02); use
    # small deterministic random values so the gating softmax is exercised.
    w_gate = 0.02 * jax.random.normal(kg, (D_in, E), dtype=jnp.float32)
    expert_bias = 0.02 * jax.random.normal(kb, (E, S, D_in), dtype=jnp.float32)
    expert_w = 0.02 * jax.random.normal(kw, (E, D_in, D_out), dtype=jnp.float32)

    out = moe_adaptor_forward(x, w_gate, expert_bias, expert_w)
    out = jax.block_until_ready(out)

    ref = moe_adaptor_reference(x, w_gate, expert_bias, expert_w)
    assert out.shape == (B, S, D_out)
    assert jnp.allclose(out, ref, atol=1e-4, rtol=1e-3), (
        float(jnp.max(jnp.abs(out - ref))))

    print("KERNEL_OK")
</pallas_src>

<mosaic_0001>
module attributes {stable_mosaic.version = 11 : i64} {
  func.func @_moe_adaptor_kernel(%arg0: i32, %arg1: memref<16x32xf32, #tpu.memory_space<vmem>>, %arg2: memref<32x4xf32, #tpu.memory_space<vmem>>, %arg3: memref<32x128xf32, #tpu.memory_space<vmem>>, %arg4: memref<4x128xf32, #tpu.memory_space<vmem>>, %arg5: memref<16x128xf32, #tpu.memory_space<vmem>>, %arg6: memref<128x32xf32, #tpu.memory_space<vmem>>, %arg7: memref<16x32xf32, #tpu.memory_space<vmem>>) attributes {dimension_semantics = [#tpu.dimension_semantics<parallel>], iteration_bounds = array<i64: 1>, scalar_prefetch = 0 : i64, scratch_operands = 0 : i64, tpu.core_type = #tpu.core_type<tc>, window_params = [{transform_indices = @transform_0, window_bounds = array<i64: 16, 32>}, {pipeline_mode = #tpu.pipeline_mode<synchronous>, transform_indices = @transform_1, window_bounds = array<i64: 32, 4>}, {pipeline_mode = #tpu.pipeline_mode<synchronous>, transform_indices = @transform_2, window_bounds = array<i64: 32, 128>}, {pipeline_mode = #tpu.pipeline_mode<synchronous>, transform_indices = @transform_3, window_bounds = array<i64: 4, 128>}, {pipeline_mode = #tpu.pipeline_mode<synchronous>, transform_indices = @transform_4, window_bounds = array<i64: 16, 128>}, {pipeline_mode = #tpu.pipeline_mode<synchronous>, transform_indices = @transform_5, window_bounds = array<i64: 128, 32>}, {transform_indices = @transform_6, window_bounds = array<i64: 16, 32>}]} {
    %c0 = arith.constant 0 : index
    %c0_0 = arith.constant 0 : index
    %0 = vector.load %arg1[%c0, %c0_0] : memref<16x32xf32, #tpu.memory_space<vmem>>, vector<16x32xf32>
    %c0_1 = arith.constant 0 : index
    %c0_2 = arith.constant 0 : index
    %1 = vector.load %arg2[%c0_1, %c0_2] : memref<32x4xf32, #tpu.memory_space<vmem>>, vector<32x4xf32>
    %cst = arith.constant dense<0.000000e+00> : vector<16x4xf32>
    %2 = tpu.matmul %0, %1, %cst {dimension_numbers = #tpu.dot_dimension_numbers<[1], [0], [0], [1], [0, 0, 1, 1], [], []>, precision = #tpu.contract_precision<fp32>} : vector<16x32xf32>, vector<32x4xf32>, vector<16x4xf32> -> vector<16x4xf32>
    %cst_3 = arith.constant dense<0xFF800000> : vector<16xf32>
    %3 = vector.multi_reduction <maximumf>, %2, %cst_3 [1] : vector<16x4xf32> to vector<16xf32>
    %4 = vector.shape_cast %3 : vector<16xf32> to vector<16x1xf32>
    %5 = vector.broadcast %4 : vector<16x1xf32> to vector<16x4xf32>
    %6 = arith.subf %2, %5 : vector<16x4xf32>
    %7 = math.exp %6 : vector<16x4xf32>
    %cst_4 = arith.constant dense<0.000000e+00> : vector<16xf32>
    %8 = vector.multi_reduction <add>, %7, %cst_4 [1] : vector<16x4xf32> to vector<16xf32>
    %9 = vector.shape_cast %8 : vector<16xf32> to vector<16x1xf32>
    %10 = vector.broadcast %9 : vector<16x1xf32> to vector<16x4xf32>
    %11 = arith.divf %7, %10 : vector<16x4xf32>
    %c0_5 = arith.constant 0 : index
    %c0_6 = arith.constant 0 : index
    %12 = vector.load %arg3[%c0_5, %c0_6] : memref<32x128xf32, #tpu.memory_space<vmem>>, vector<32x128xf32>
    %cst_7 = arith.constant dense<0.000000e+00> : vector<16x128xf32>
    %13 = tpu.matmul %0, %12, %cst_7 {dimension_numbers = #tpu.dot_dimension_numbers<[1], [0], [0], [1], [0, 0, 1, 1], [], []>, precision = #tpu.contract_precision<fp32>} : vector<16x32xf32>, vector<32x128xf32>, vector<16x128xf32> -> vector<16x128xf32>
    %c0_8 = arith.constant 0 : index
    %c0_9 = arith.constant 0 : index
    %14 = vector.load %arg5[%c0_8, %c0_9] : memref<16x128xf32, #tpu.memory_space<vmem>>, vector<16x128xf32>
    %15 = arith.subf %13, %14 : vector<16x128xf32>
    %c0_10 = arith.constant 0 : index
    %c0_11 = arith.constant 0 : index
    %16 = vector.load %arg4[%c0_10, %c0_11] : memref<4x128xf32, #tpu.memory_space<vmem>>, vector<4x128xf32>
    %cst_12 = arith.constant dense<0.000000e+00> : vector<16x128xf32>
    %17 = tpu.matmul %11, %16, %cst_12 {dimension_numbers = #tpu.dot_dimension_numbers<[1], [0], [0], [1], [0, 0, 1, 1], [], []>, precision = #tpu.contract_precision<fp32>} : vector<16x4xf32>, vector<4x128xf32>, vector<16x128xf32> -> vector<16x128xf32>
    %18 = arith.mulf %17, %15 : vector<16x128xf32>
    %c0_13 = arith.constant 0 : index
    %c0_14 = arith.constant 0 : index
    %19 = vector.load %arg6[%c0_13, %c0_14] : memref<128x32xf32, #tpu.memory_space<vmem>>, vector<128x32xf32>
    %cst_15 = arith.constant dense<0.000000e+00> : vector<16x32xf32>
    %20 = tpu.matmul %18, %19, %cst_15 {dimension_numbers = #tpu.dot_dimension_numbers<[1], [0], [0], [1], [0, 0, 1, 1], [], []>, precision = #tpu.contract_precision<fp32>} : vector<16x128xf32>, vector<128x32xf32>, vector<16x32xf32> -> vector<16x32xf32>
    %c0_16 = arith.constant 0 : index
    %c0_17 = arith.constant 0 : index
    %21 = vector.load %arg7[%c0_16, %c0_17] : memref<16x32xf32, #tpu.memory_space<vmem>>, vector<16x32xf32>
    tpu.vector_store %arg7[%c0_16, %c0_17], %20 {strides = array<i32>} : memref<16x32xf32, #tpu.memory_space<vmem>>, vector<16x32xf32>,
    return
  }
  func.func @transform_0(%arg0: i32) -> (i32, i32) {
    %c0_i32 = arith.constant 0 : i32
    %c0_i32_0 = arith.constant 0 : i32
    return %arg0, %c0_i32 : i32, i32
  }
  func.func @transform_1(%arg0: i32) -> (i32, i32) {
    %c0_i32 = arith.constant 0 : i32
    %c0_i32_0 = arith.constant 0 : i32
    %c0_i32_1 = arith.constant 0 : i32
    return %c0_i32, %c0_i32_0 : i32, i32
  }
  func.func @transform_2(%arg0: i32) -> (i32, i32) {
    %c0_i32 = arith.constant 0 : i32
    %c0_i32_0 = arith.constant 0 : i32
    %c0_i32_1 = arith.constant 0 : i32
    return %c0_i32, %c0_i32_0 : i32, i32
  }
  func.func @transform_3(%arg0: i32) -> (i32, i32) {
    %c0_i32 = arith.constant 0 : i32
    %c0_i32_0 = arith.constant 0 : i32
    %c0_i32_1 = arith.constant 0 : i32
    return %c0_i32, %c0_i32_0 : i32, i32
  }
  func.func @transform_4(%arg0: i32) -> (i32, i32) {
    %c0_i32 = arith.constant 0 : i32
    %c0_i32_0 = arith.constant 0 : i32
    %c0_i32_1 = arith.constant 0 : i32
    return %c0_i32, %c0_i32_0 : i32, i32
  }
  func.func @transform_5(%arg0: i32) -> (i32, i32) {
    %c0_i32 = arith.constant 0 : i32
    %c0_i32_0 = arith.constant 0 : i32
    %c0_i32_1 = arith.constant 0 : i32
    return %c0_i32, %c0_i32_0 : i32, i32
  }
  func.func @transform_6(%arg0: i32) -> (i32, i32) {
    %c0_i32 = arith.constant 0 : i32
    %c0_i32_0 = arith.constant 0 : i32
    return %arg0, %c0_i32 : i32, i32
  }
}

</mosaic_0001>

<llo_original>
// kernel: tpu_custom_call.1
$region0: #{tpu_custom_call.1}
  #allocation0 [shape = 'u32[]', space=smem, size = 0x4, offset = 0x4, fixed_abs, tag = 'smem constant byte address 0x4 - core index']
  #allocation1 [shape = 'u32[144,128]{1,0:T(1,128)}', space=vmem, size = 0x12000, scoped, tag = 'internal scratch']
  %s0 = inlined_call_operand.vmem [shape: f32[16,32], index: 0, kind: input, shape index: {}]
  %s1 = inlined_call_operand.vmem [shape: f32[32,4], index: 1, kind: input, shape index: {}]
  %s2 = inlined_call_operand.vmem [shape: f32[32,128], index: 2, kind: input, shape index: {}]
  %s3 = inlined_call_operand.vmem [shape: f32[4,128], index: 3, kind: input, shape index: {}]
  %s4 = inlined_call_operand.vmem [shape: f32[16,128], index: 4, kind: input, shape index: {}]
  %s5 = inlined_call_operand.vmem [shape: f32[128,32], index: 5, kind: input, shape index: {}]
  %s6 = inlined_call_operand.hbm [shape: f32[16,32], index: 6, kind: output, shape index: {}]
  %s7 = sld [smem:[#allocation0]]
  $region34: #{tpu_custom_call.1} parent=0
    _
  %s9 = ssub.s32 1, %s7
  %s10 = scalar_select 0, %s9, %s7
  $region1: #{tpu_custom_call.1} parent=0
    #allocation2 [shape = 'u8[8192]{0}', space=vmem, size = 0x2000, scoped, tag = 'output window, operand 0, single buffered']
    #allocation3 [shape = 's32[1]{0}', space=sflag, size = 0x4, scoped, tag = 'scoped memory for tpu_custom_call.1']
    %11 = vsyncpa [#allocation3], 0
    // Predicated region
    $region2: #{tpu_custom_call.1} parent=1 // pred_check
      _
    $region3: #{tpu_custom_call.1} parent=1 // pred_check_branch
      %13 = sbr.rel (0) target = $region5
    $region4: #{tpu_custom_call.1} parent=1 // pred_region
      _
    $region5: #{tpu_custom_call.1} parent=1 // pred_fallthru
      _
    // Predicated region
    $region6: #{tpu_custom_call.1} parent=1 // pred_check
      _
    $region7: #{tpu_custom_call.1} parent=1 // pred_check_branch
      %15 = sbr.rel (0) target = $region9
    $region8: #{tpu_custom_call.1} parent=1 // pred_region
      _
    $region9: #{tpu_custom_call.1} parent=1 // pred_fallthru
      _
    // Predicated region
    $region10: #{tpu_custom_call.1} parent=1 // pred_check
      _
    $region11: #{tpu_custom_call.1} parent=1 // pred_check_branch
      %17 = sbr.rel (0) target = $region13
    $region12: #{tpu_custom_call.1} parent=1 // pred_region
      _
    $region13: #{tpu_custom_call.1} parent=1 // pred_fallthru
      _
    // Predicated region
    $region14: #{tpu_custom_call.1} parent=1 // pred_check
      _
    $region15: #{tpu_custom_call.1} parent=1 // pred_check_branch
      %19 = sbr.rel (0) target = $region17
    $region16: #{tpu_custom_call.1} parent=1 // pred_region
      _
    $region17: #{tpu_custom_call.1} parent=1 // pred_fallthru
      _
    // Predicated region
    $region18: #{tpu_custom_call.1} parent=1 // pred_check
      _
    $region19: #{tpu_custom_call.1} parent=1 // pred_check_branch
      %21 = sbr.rel (0) target = $region21
    $region20: #{tpu_custom_call.1} parent=1 // pred_region
      _
    $region21: #{tpu_custom_call.1} parent=1 // pred_fallthru
      _
    // Predicated region
    $region22: #{tpu_custom_call.1} parent=1 // pred_check
      _
    $region23: #{tpu_custom_call.1} parent=1 // pred_check_branch
      %23 = sbr.rel (0) target = $region25
    $region24: #{tpu_custom_call.1} parent=1 // pred_region
      _
    $region25: #{tpu_custom_call.1} parent=1 // pred_fallthru
      _
    %v24 = vld [vmem:[%s0] sm:$0xff]
    %v25 = vld [vmem:[%s0 + $0x8] sm:$0xff]
    %v26 = vld [vmem:[%s1] sm:$0xff]
    %v27 = vld [vmem:[%s1 + $0x8] sm:$0xff]
    %v28 = vld [vmem:[%s1 + $0x10] sm:$0xff]
    %v29 = vld [vmem:[%s1 + $0x18] sm:$0xff]
    %vm30 = vcmask 261120
    %v32 = vsel %vm30, %v24, 0
    %v35 = vsel %vm30, %v25, 0
    %37 = vmatprep.subr.mxu0 0.0
    %v38 = vand.u32 %v26, 4294901760
    %39 = vmatpush1.msra.mxu0 %v38
    %40 = vmatprep.subr.mxu0 0.0
    %v41 = vand.u32 %v27, 4294901760
    %42 = vmatpush1.msra.mxu0 %v41
    %43 = vmatprep.subr.mxu0 0.0
    %v44 = vand.u32 %v28, 4294901760
    %45 = vmatpush1.msra.mxu0 %v44
    %46 = vmatprep.subr.mxu0 0.0
    %v47 = vand.u32 %v29, 4294901760
    %48 = vmatpush1.msra.mxu0 %v47
    %49 = vmatprep.subr.mxu0 0.0
    %50 = vmatpush1.msra.mxu0 0.0
    %51 = vmatprep.subr.mxu0 0.0
    %52 = vmatpush1.msra.mxu0 0.0
    %53 = vmatprep.subr.mxu0 0.0
    %54 = vmatpush1.msra.mxu0 0.0
    %55 = vmatprep.subr.mxu0 0.0
    %56 = vmatpush1.msra.mxu0 0.0
    %57 = vmatprep.subr.mxu0 0.0
    %58 = vmatpush1.msra.mxu0 0.0
    %59 = vmatprep.subr.mxu0 0.0
    %60 = vmatpush1.msra.mxu0 0.0
    %61 = vmatprep.subr.mxu0 0.0
    %62 = vmatpush1.msra.mxu0 0.0
    %63 = vmatprep.subr.mxu0 0.0
    %64 = vmatpush1.msra.mxu0 0.0
    %65 = vmatprep.subr.mxu0 0.0
    %66 = vmatpush1.msra.mxu0 0.0
    %67 = vmatprep.subr.mxu0 0.0
    %68 = vmatpush1.msra.mxu0 0.0
    %69 = vmatprep.subr.mxu0 0.0
    %70 = vmatpush1.msra.mxu0 0.0
    %71 = vmatprep.subr.mxu0 0.0
    %72 = vmatpush1.msra.mxu0 0.0
    %73 = vmatprep.subr.mxu0 0.0
    %74 = vmatpush1.msra.mxu0 0.0
    %75 = vmatprep.subr.mxu0 0.0
    %76 = vmatpush1.msra.mxu0 0.0
    %77 = vmatprep.subr.mxu0 0.0
    %78 = vmatpush1.msra.mxu0 0.0
    %79 = vmatprep.subr.mxu0 0.0
    %80 = vmatpush1.msra.mxu0 0.0
    %81 = vmatprep.subr.mxu0 0.0
    %82 = vmatpush1.msra.mxu0 0.0
    %83 = vmatprep.subr.mxu0 0.0
    %84 = vmatpush1.msra.mxu0 0.0
    %85 = vmatprep.subr.mxu0 0.0
    %86 = vmatpush1.msra.mxu0 0.0
    %87 = vmatprep.subr.mxu0 0.0
    %88 = vmatpush1.msra.mxu0 0.0
    %89 = vmatprep.subr.mxu0 0.0
    %90 = vmatpush1.msra.mxu0 0.0
    %91 = vmatprep.subr.mxu0 0.0
    %92 = vmatpush1.msra.mxu0 0.0
    %93 = vmatprep.subr.mxu0 0.0
    %94 = vmatpush1.msra.mxu0 0.0
    %95 = vmatprep.subr.mxu0 0.0
    %96 = vmatpush1.msra.mxu0 0.0
    %97 = vmatprep.subr.mxu0 0.0
    %98 = vmatpush1.msra.mxu0 0.0
    %99 = vmatprep.subr.mxu0 0.0
    %100 = vmatpush1.msra.mxu0 0.0
    %101 = vmatprep.subr.mxu0 0.0
    %102 = vmatpush1.msra.mxu0 0.0
    %103 = vmatprep.subr.mxu0 0.0
    %104 = vmatpush1.msra.mxu0 0.0
    %105 = vmatprep.mubr.f32.mxu0 0.0
    %v106 = vand.u32 %v32, 4294901760
    %v107 = vsub.f32 %v32, %v106
    %v108 = vand.u32 %v107, 4294901760
    %v109 = vsub.f32 %v107, %v108
    %v110 = vand.u32 %v109, 4294901760
    %111 = vmatmul.mubr.f32.gmra.mrb[0].mxu0 %v110
    %v112 = vpop.f32.mrb[0].mxu0
    %v113 = vadd.f32 0.0, %v112
    %v114 = vpop.f32.mrb[0].mxu0
    %115 = vmatprep.mubr.f32.mxu0 0.0
    %v116 = vand.u32 %v35, 4294901760
    %v117 = vsub.f32 %v35, %v116
    %v118 = vand.u32 %v117, 4294901760
    %v119 = vsub.f32 %v117, %v118
    %v120 = vand.u32 %v119, 4294901760
    %121 = vmatmul.mubr.f32.gmra.mrb[0].mxu0 %v120
    %v122 = vpop.f32.mrb[0].mxu0
    %v123 = vadd.f32 0.0, %v122
    %v124 = vpop.f32.mrb[0].mxu0
    %125 = vdwg.mxu0
    %126 = vmatprep.subr.mxu0 0.0
    %v127 = vand.u32 %v26, 4294901760
    %v128 = vsub.f32 %v26, %v127
    %v129 = vand.u32 %v128, 4294901760
    %v130 = vsub.f32 %v128, %v129
    %v131 = vand.u32 %v130, 4294901760
    %132 = vmatpush1.msra.mxu0 %v131
    %133 = vmatprep.subr.mxu0 0.0
    %v134 = vand.u32 %v27, 4294901760
    %v135 = vsub.f32 %v27, %v134
    %v136 = vand.u32 %v135, 4294901760
    %v137 = vsub.f32 %v135, %v136
    %v138 = vand.u32 %v137, 4294901760
    %139 = vmatpush1.msra.mxu0 %v138
    %140 = vmatprep.subr.mxu0 0.0
    %v141 = vand.u32 %v28, 4294901760
    %v142 = vsub.f32 %v28, %v141
    %v143 = vand.u32 %v142, 4294901760
    %v144 = vsub.f32 %v142, %v143
    %v145 = vand.u32 %v144, 4294901760
    %146 = vmatpush1.msra.mxu0 %v145
    %147 = vmatprep.subr.mxu0 0.0
    %v148 = vand.u32 %v29, 4294901760
    %v149 = vsub.f32 %v29, %v148
    %v150 = vand.u32 %v149, 4294901760
    %v151 = vsub.f32 %v149, %v150
    %v152 = vand.u32 %v151, 4294901760
    %153 = vmatpush1.msra.mxu0 %v152
    %154 = vmatprep.subr.mxu0 0.0
    %155 = vmatpush1.msra.mxu0 0.0
    %156 = vmatprep.subr.mxu0 0.0
    %157 = vmatpush1.msra.mxu0 0.0
    %158 = vmatprep.subr.mxu0 0.0
    %159 = vmatpush1.msra.mxu0 0.0
    %160 = vmatprep.subr.mxu0 0.0
    %161 = vmatpush1.msra.mxu0 0.0
    %162 = vmatprep.subr.mxu0 0.0
    %163 = vmatpush1.msra.mxu0 0.0
    %164 = vmatprep.subr.mxu0 0.0
    %165 = vmatpush1.msra.mxu0 0.0
    %166 = vmatprep.subr.mxu0 0.0
    %167 = vmatpush1.msra.mxu0 0.0
    %168 = vmatprep.subr.mxu0 0.0
    %169 = vmatpush1.msra.mxu0 0.0
    %170 = vmatprep.subr.mxu0 0.0
    %171 = vmatpush1.msra.mxu0 0.0
    %172 = vmatprep.subr.mxu0 0.0
    %173 = vmatpush1.msra.mxu0 0.0
    %174 = vmatprep.subr.mxu0 0.0
    %175 = vmatpush1.msra.mxu0 0.0
    %176 = vmatprep.subr.mxu0 0.0
    %177 = vmatpush1.msra.mxu0 0.0
    %178 = vmatprep.subr.mxu0 0.0
    %179 = vmatpush1.msra.mxu0 0.0
    %180 = vmatprep.subr.mxu0 0.0
    %181 = vmatpush1.msra.mxu0 0.0
    %182 = vmatprep.subr.mxu0 0.0
    %183 = vmatpush1.msra.mxu0 0.0
    %184 = vmatprep.subr.mxu0 0.0
    %185 = vmatpush1.msra.mxu0 0.0
    %186 = vmatprep.subr.mxu0 0.0
    %187 = vmatpush1.msra.mxu0 0.0
    %188 = vmatprep.subr.mxu0 0.0
    %189 = vmatpush1.msra.mxu0 0.0
    %190 = vmatprep.subr.mxu0 0.0
    %191 = vmatpush1.msra.mxu0 0.0
    %192 = vmatprep.subr.mxu0 0.0
    %193 = vmatpush1.msra.mxu0 0.0
    %194 = vmatprep.subr.mxu0 0.0
    %195 = vmatpush1.msra.mxu0 0.0
    %196 = vmatprep.subr.mxu0 0.0
    %197 = vmatpush1.msra.mxu0 0.0
    %198 = vmatprep.subr.mxu0 0.0
    %199 = vmatpush1.msra.mxu0 0.0
    %200 = vmatprep.subr.mxu0 0.0
    %201 = vmatpush1.msra.mxu0 0.0
    %202 = vmatprep.subr.mxu0 0.0
    %203 = vmatpush1.msra.mxu0 0.0
    %204 = vmatprep.subr.mxu0 0.0
    %205 = vmatpush1.msra.mxu0 0.0
    %206 = vmatprep.subr.mxu0 0.0
    %207 = vmatpush1.msra.mxu0 0.0
    %208 = vmatprep.subr.mxu0 0.0
    %209 = vmatpush1.msra.mxu0 0.0
    %210 = vmatprep.mubr.f32.mxu0 0.0
    %v211 = vand.u32 %v32, 4294901760
    %212 = vmatmul.mubr.f32.gmra.mrb[0].mxu0 %v211
    %v213 = vpop.f32.mrb[0].mxu0
    %v214 = vadd.f32 %v113, %v213
    %v215 = vpop.f32.mrb[0].mxu0
    %216 = vmatprep.mubr.f32.mxu0 0.0
    %v217 = vand.u32 %v35, 4294901760
    %218 = vmatmul.mubr.f32.gmra.mrb[0].mxu0 %v217
    %v219 = vpop.f32.mrb[0].mxu0
    %v220 = vadd.f32 %v123, %v219
    %v221 = vpop.f32.mrb[0].mxu0
    %222 = vdwg.mxu0
    %223 = vmatprep.subr.mxu0 0.0
    %v224 = vand.u32 %v26, 4294901760
    %v225 = vsub.f32 %v26, %v224
    %226 = vmatpush1.msra.mxu0 %v225
    %227 = vmatprep.subr.mxu0 0.0
    %v228 = vand.u32 %v27, 4294901760
    %v229 = vsub.f32 %v27, %v228
    %230 = vmatpush1.msra.mxu0 %v229
    %231 = vmatprep.subr.mxu0 0.0
    %v232 = vand.u32 %v28, 4294901760
    %v233 = vsub.f32 %v28, %v232
    %234 = vmatpush1.msra.mxu0 %v233
    %235 = vmatprep.subr.mxu0 0.0
    %v236 = vand.u32 %v29, 4294901760
    %v237 = vsub.f32 %v29, %v236
    %238 = vmatpush1.msra.mxu0 %v237
    %239 = vmatprep.subr.mxu0 0.0
    %240 = vmatpush1.msra.mxu0 0.0
    %241 = vmatprep.subr.mxu0 0.0
    %242 = vmatpush1.msra.mxu0 0.0
    %243 = vmatprep.subr.mxu0 0.0
    %244 = vmatpush1.msra.mxu0 0.0
    %245 = vmatprep.subr.mxu0 0.0
    %246 = vmatpush1.msra.mxu0 0.0
    %247 = vmatprep.subr.mxu0 0.0
    %248 = vmatpush1.msra.mxu0 0.0
    %249 = vmatprep.subr.mxu0 0.0
    %250 = vmatpush1.msra.mxu0 0.0
    %251 = vmatprep.subr.mxu0 0.0
    %252 = vmatpush1.msra.mxu0 0.0
    %253 = vmatprep.subr.mxu0 0.0
    %254 = vmatpush1.msra.mxu0 0.0
    %255 = vmatprep.subr.mxu0 0.0
    %256 = vmatpush1.msra.mxu0 0.0
    %257 = vmatprep.subr.mxu0 0.0
    %258 = vmatpush1.msra.mxu0 0.0
    %259 = vmatprep.subr.mxu0 0.0
    %260 = vmatpush1.msra.mxu0 0.0
    %261 = vmatprep.subr.mxu0 0.0
    %262 = vmatpush1.msra.mxu0 0.0
    %263 = vmatprep.subr.mxu0 0.0
    %264 = vmatpush1.msra.mxu0 0.0
    %265 = vmatprep.subr.mxu0 0.0
    %266 = vmatpush1.msra.mxu0 0.0
    %267 = vmatprep.subr.mxu0 0.0
    %268 = vmatpush1.msra.mxu0 0.0
    %269 = vmatprep.subr.mxu0 0.0
    %270 = vmatpush1.msra.mxu0 0.0
    %271 = vmatprep.subr.mxu0 0.0
    %272 = vmatpush1.msra.mxu0 0.0
    %273 = vmatprep.subr.mxu0 0.0
    %274 = vmatpush1.msra.mxu0 0.0
    %275 = vmatprep.subr.mxu0 0.0
    %276 = vmatpush1.msra.mxu0 0.0
    %277 = vmatprep.subr.mxu0 0.0
    %278 = vmatpush1.msra.mxu0 0.0
    %279 = vmatprep.subr.mxu0 0.0
    %280 = vmatpush1.msra.mxu0 0.0
    %281 = vmatprep.subr.mxu0 0.0
    %282 = vmatpush1.msra.mxu0 0.0
    %283 = vmatprep.subr.mxu0 0.0
    %284 = vmatpush1.msra.mxu0 0.0
    %285 = vmatprep.subr.mxu0 0.0
    %286 = vmatpush1.msra.mxu0 0.0
    %287 = vmatprep.subr.mxu0 0.0
    %288 = vmatpush1.msra.mxu0 0.0
    %289 = vmatprep.subr.mxu0 0.0
    %290 = vmatpush1.msra.mxu0 0.0
    %291 = vmatprep.subr.mxu0 0.0
    %292 = vmatpush1.msra.mxu0 0.0
    %293 = vmatprep.subr.mxu0 0.0
    %294 = vmatpush1.msra.mxu0 0.0
    %295 = vmatprep.mubr.f32.mxu0 0.0
    %v296 = vand.u32 %v32, 4294901760
    %v297 = vsub.f32 %v32, %v296
    %298 = vmatmul.mubr.f32.gmra.mrb[0].mxu0 %v297
    %v299 = vpop.f32.mrb[0].mxu0
    %v300 = vadd.f32 %v214, %v299
    %v301 = vpop.f32.mrb[0].mxu0
    %302 = vmatprep.mubr.f32.mxu0 0.0
    %v303 = vand.u32 %v35, 4294901760
    %v304 = vsub.f32 %v35, %v303
    %305 = vmatmul.mubr.f32.gmra.mrb[0].mxu0 %v304
    %v306 = vpop.f32.mrb[0].mxu0
    %v307 = vadd.f32 %v220, %v306
    %v308 = vpop.f32.mrb[0].mxu0
    %309 = vdwg.mxu0
    %310 = vmatprep.subr.mxu0 0.0
    %v311 = vand.u32 %v26, 4294901760
    %312 = vmatpush1.msra.mxu0 %v311
    %313 = vmatprep.subr.mxu0 0.0
    %v314 = vand.u32 %v27, 4294901760
    %315 = vmatpush1.msra.mxu0 %v314
    %316 = vmatprep.subr.mxu0 0.0
    %v317 = vand.u32 %v28, 4294901760
    %318 = vmatpush1.msra.mxu0 %v317
    %319 = vmatprep.subr.mxu0 0.0
    %v320 = vand.u32 %v29, 4294901760
    %321 = vmatpush1.msra.mxu0 %v320
    %322 = vmatprep.subr.mxu0 0.0
    %323 = vmatpush1.msra.mxu0 0.0
    %324 = vmatprep.subr.mxu0 0.0
    %325 = vmatpush1.msra.mxu0 0.0
    %326 = vmatprep.subr.mxu0 0.0
    %327 = vmatpush1.msra.mxu0 0.0
    %328 = vmatprep.subr.mxu0 0.0
    %329 = vmatpush1.msra.mxu0 0.0
    %330 = vmatprep.subr.mxu0 0.0
    %331 = vmatpush1.msra.mxu0 0.0
    %332 = vmatprep.subr.mxu0 0.0
    %333 = vmatpush1.msra.mxu0 0.0
    %334 = vmatprep.subr.mxu0 0.0
    %335 = vmatpush1.msra.mxu0 0.0
    %336 = vmatprep.subr.mxu0 0.0
    %337 = vmatpush1.msra.mxu0 0.0
    %338 = vmatprep.subr.mxu0 0.0
    %339 = vmatpush1.msra.mxu0 0.0
    %340 = vmatprep.subr.mxu0 0.0
    %341 = vmatpush1.msra.mxu0 0.0
    %342 = vmatprep.subr.mxu0 0.0
    %343 = vmatpush1.msra.mxu0 0.0
    %344 = vmatprep.subr.mxu0 0.0
    %345 = vmatpush1.msra.mxu0 0.0
    %346 = vmatprep.subr.mxu0 0.0
    %347 = vmatpush1.msra.mxu0 0.0
    %348 = vmatprep.subr.mxu0 0.0
    %349 = vmatpush1.msra.mxu0 0.0
    %350 = vmatprep.subr.mxu0 0.0
    %351 = vmatpush1.msra.mxu0 0.0
    %352 = vmatprep.subr.mxu0 0.0
    %353 = vmatpush1.msra.mxu0 0.0
    %354 = vmatprep.subr.mxu0 0.0
    %355 = vmatpush1.msra.mxu0 0.0
    %356 = vmatprep.subr.mxu0 0.0
    %357 = vmatpush1.msra.mxu0 0.0
    %358 = vmatprep.subr.mxu0 0.0
    %359 = vmatpush1.msra.mxu0 0.0
    %360 = vmatprep.subr.mxu0 0.0
    %361 = vmatpush1.msra.mxu0 0.0
    %362 = vmatprep.subr.mxu0 0.0
    %363 = vmatpush1.msra.mxu0 0.0
    %364 = vmatprep.subr.mxu0 0.0
    %365 = vmatpush1.msra.mxu0 0.0
    %366 = vmatprep.subr.mxu0 0.0
    %367 = vmatpush1.msra.mxu0 0.0
    %368 = vmatprep.subr.mxu0 0.0
    %369 = vmatpush1.msra.mxu0 0.0
    %370 = vmatprep.subr.mxu0 0.0
    %371 = vmatpush1.msra.mxu0 0.0
    %372 = vmatprep.subr.mxu0 0.0
    %373 = vmatpush1.msra.mxu0 0.0
    %374 = vmatprep.subr.mxu0 0.0
    %375 = vmatpush1.msra.mxu0 0.0
    %376 = vmatprep.subr.mxu0 0.0
    %377 = vmatpush1.msra.mxu0 0.0
    %378 = vmatprep.mubr.f32.mxu0 0.0
    %v379 = vand.u32 %v32, 4294901760
    %v380 = vsub.f32 %v32, %v379
    %v381 = vand.u32 %v380, 4294901760
    %382 = vmatmul.mubr.f32.gmra.mrb[0].mxu0 %v381
    %v383 = vpop.f32.mrb[0].mxu0
    %v384 = vadd.f32 %v300, %v383
    %v385 = vpop.f32.mrb[0].mxu0
    %386 = vmatprep.mubr.f32.mxu0 0.0
    %v387 = vand.u32 %v35, 4294901760
    %v388 = vsub.f32 %v35, %v387
    %v389 = vand.u32 %v388, 4294901760
    %390 = vmatmul.mubr.f32.gmra.mrb[0].mxu0 %v389
    %v391 = vpop.f32.mrb[0].mxu0
    %v392 = vadd.f32 %v307, %v391
    %v393 = vpop.f32.mrb[0].mxu0
    %394 = vdwg.mxu0
    %395 = vmatprep.subr.mxu0 0.0
    %v396 = vand.u32 %v26, 4294901760
    %v397 = vsub.f32 %v26, %v396
    %v398 = vand.u32 %v397, 4294901760
    %399 = vmatpush1.msra.mxu0 %v398
    %400 = vmatprep.subr.mxu0 0.0
    %v401 = vand.u32 %v27, 4294901760
    %v402 = vsub.f32 %v27, %v401
    %v403 = vand.u32 %v402, 4294901760
    %404 = vmatpush1.msra.mxu0 %v403
    %405 = vmatprep.subr.mxu0 0.0
    %v406 = vand.u32 %v28, 4294901760
    %v407 = vsub.f32 %v28, %v406
    %v408 = vand.u32 %v407, 4294901760
    %409 = vmatpush1.msra.mxu0 %v408
    %410 = vmatprep.subr.mxu0 0.0
    %v411 = vand.u32 %v29, 4294901760
    %v412 = vsub.f32 %v29, %v411
    %v413 = vand.u32 %v412, 4294901760
    %414 = vmatpush1.msra.mxu0 %v413
    %415 = vmatprep.subr.mxu0 0.0
    %416 = vmatpush1.msra.mxu0 0.0
    %417 = vmatprep.subr.mxu0 0.0
    %418 = vmatpush1.msra.mxu0 0.0
    %419 = vmatprep.subr.mxu0 0.0
    %420 = vmatpush1.msra.mxu0 0.0
    %421 = vmatprep.subr.mxu0 0.0
    %422 = vmatpush1.msra.mxu0 0.0
    %423 = vmatprep.subr.mxu0 0.0
    %424 = vmatpush1.msra.mxu0 0.0
    %425 = vmatprep.subr.mxu0 0.0
    %426 = vmatpush1.msra.mxu0 0.0
    %427 = vmatprep.subr.mxu0 0.0
    %428 = vmatpush1.msra.mxu0 0.0
    %429 = vmatprep.subr.mxu0 0.0
    %430 = vmatpush1.msra.mxu0 0.0
    %431 = vmatprep.subr.mxu0 0.0
    %432 = vmatpush1.msra.mxu0 0.0
    %433 = vmatprep.subr.mxu0 0.0
    %434 = vmatpush1.msra.mxu0 0.0
    %435 = vmatprep.subr.mxu0 0.0
    %436 = vmatpush1.msra.mxu0 0.0
    %437 = vmatprep.subr.mxu0 0.0
    %438 = vmatpush1.msra.mxu0 0.0
    %439 = vmatprep.subr.mxu0 0.0
    %440 = vmatpush1.msra.mxu0 0.0
    %441 = vmatprep.subr.mxu0 0.0
    %442 = vmatpush1.msra.mxu0 0.0
    %443 = vmatprep.subr.mxu0 0.0
    %444 = vmatpush1.msra.mxu0 0.0
    %445 = vmatprep.subr.mxu0 0.0
    %446 = vmatpush1.msra.mxu0 0.0
    %447 = vmatprep.subr.mxu0 0.0
    %448 = vmatpush1.msra.mxu0 0.0
    %449 = vmatprep.subr.mxu0 0.0
    %450 = vmatpush1.msra.mxu0 0.0
    %451 = vmatprep.subr.mxu0 0.0
    %452 = vmatpush1.msra.mxu0 0.0
    %453 = vmatprep.subr.mxu0 0.0
    %454 = vmatpush1.msra.mxu0 0.0
    %455 = vmatprep.subr.mxu0 0.0
    %456 = vmatpush1.msra.mxu0 0.0
    %457 = vmatprep.subr.mxu0 0.0
    %458 = vmatpush1.msra.mxu0 0.0
    %459 = vmatprep.subr.mxu0 0.0
    %460 = vmatpush1.msra.mxu0 0.0
    %461 = vmatprep.subr.mxu0 0.0
    %462 = vmatpush1.msra.mxu0 0.0
    %463 = vmatprep.subr.mxu0 0.0
    %464 = vmatpush1.msra.mxu0 0.0
    %465 = vmatprep.subr.mxu0 0.0
    %466 = vmatpush1.msra.mxu0 0.0
    %467 = vmatprep.subr.mxu0 0.0
    %468 = vmatpush1.msra.mxu0 0.0
    %469 = vmatprep.subr.mxu0 0.0
    %470 = vmatpush1.msra.mxu0 0.0
    %471 = vmatprep.mubr.f32.mxu0 0.0
    %v472 = vand.u32 %v32, 4294901760
    %473 = vmatmul.mubr.f32.gmra.mrb[0].mxu0 %v472
    %v474 = vpop.f32.mrb[0].mxu0
    %v475 = vadd.f32 %v384, %v474
    %v476 = vpop.f32.mrb[0].mxu0
    %477 = vmatprep.mubr.f32.mxu0 0.0
    %v478 = vand.u32 %v35, 4294901760
    %479 = vmatmul.mubr.f32.gmra.mrb[0].mxu0 %v478
    %v480 = vpop.f32.mrb[0].mxu0
    %v481 = vadd.f32 %v392, %v480
    %v482 = vpop.f32.mrb[0].mxu0
    %483 = vdwg.mxu0
    %484 = vmatprep.subr.mxu0 0.0
    %v485 = vand.u32 %v26, 4294901760
    %486 = vmatpush1.msra.mxu0 %v485
    %487 = vmatprep.subr.mxu0 0.0
    %v488 = vand.u32 %v27, 4294901760
    %489 = vmatpush1.msra.mxu0 %v488
    %490 = vmatprep.subr.mxu0 0.0
    %v491 = vand.u32 %v28, 4294901760
    %492 = vmatpush1.msra.mxu0 %v491
    %493 = vmatprep.subr.mxu0 0.0
    %v494 = vand.u32 %v29, 4294901760
    %495 = vmatpush1.msra.mxu0 %v494
    %496 = vmatprep.subr.mxu0 0.0
    %497 = vmatpush1.msra.mxu0 0.0
    %498 = vmatprep.subr.mxu0 0.0
    %499 = vmatpush1.msra.mxu0 0.0
    %500 = vmatprep.subr.mxu0 0.0
    %501 = vmatpush1.msra.mxu0 0.0
    %502 = vmatprep.subr.mxu0 0.0
    %503 = vmatpush1.msra.mxu0 0.0
    %504 = vmatprep.subr.mxu0 0.0
    %505 = vmatpush1.msra.mxu0 0.0
    %506 = vmatprep.subr.mxu0 0.0
    %507 = vmatpush1.msra.mxu0 0.0
    %508 = vmatprep.subr.mxu0 0.0
    %509 = vmatpush1.msra.mxu0 0.0
    %510 = vmatprep.subr.mxu0 0.0
    %511 = vmatpush1.msra.mxu0 0.0
    %512 = vmatprep.subr.mxu0 0.0
    %513 = vmatpush1.msra.mxu0 0.0
    %514 = vmatprep.subr.mxu0 0.0
    %515 = vmatpush1.msra.mxu0 0.0
    %516 = vmatprep.subr.mxu0 0.0
    %517 = vmatpush1.msra.mxu0 0.0
    %518 = vmatprep.subr.mxu0 0.0
    %519 = vmatpush1.msra.mxu0 0.0
    %520 = vmatprep.subr.mxu0 0.0
    %521 = vmatpush1.msra.mxu0 0.0
    %522 = vmatprep.subr.mxu0 0.0
    %523 = vmatpush1.msra.mxu0 0.0
    %524 = vmatprep.subr.mxu0 0.0
    %525 = vmatpush1.msra.mxu0 0.0
    %526 = vmatprep.subr.mxu0 0.0
    %527 = vmatpush1.msra.mxu0 0.0
    %528 = vmatprep.subr.mxu0 0.0
    %529 = vmatpush1.msra.mxu0 0.0
    %530 = vmatprep.subr.mxu0 0.0
    %531 = vmatpush1.msra.mxu0 0.0
    %532 = vmatprep.subr.mxu0 0.0
    %533 = vmatpush1.msra.mxu0 0.0
    %534 = vmatprep.subr.mxu0 0.0
    %535 = vmatpush1.msra.mxu0 0.0
    %536 = vmatprep.subr.mxu0 0.0
    %537 = vmatpush1.msra.mxu0 0.0
    %538 = vmatprep.subr.mxu0 0.0
    %539 = vmatpush1.msra.mxu0 0.0
    %540 = vmatprep.subr.mxu0 0.0
    %541 = vmatpush1.msra.mxu0 0.0
    %542 = vmatprep.subr.mxu0 0.0
    %543 = vmatpush1.msra.mxu0 0.0
    %544 = vmatprep.subr.mxu0 0.0
    %545 = vmatpush1.msra.mxu0 0.0
    %546 = vmatprep.subr.mxu0 0.0
    %547 = vmatpush1.msra.mxu0 0.0
    %548 = vmatprep.subr.mxu0 0.0
    %549 = vmatpush1.msra.mxu0 0.0
    %550 = vmatprep.subr.mxu0 0.0
    %551 = vmatpush1.msra.mxu0 0.0
    %552 = vmatprep.mubr.f32.mxu0 0.0
    %v553 = vand.u32 %v32, 4294901760
    %554 = vmatmul.mubr.f32.gmra.mrb[0].mxu0 %v553
    %v555 = vpop.f32.mrb[0].mxu0
    %v556 = vadd.f32 %v475, %v555
    %v557 = vpop.f32.mrb[0].mxu0
    %558 = vmatprep.mubr.f32.mxu0 0.0
    %v559 = vand.u32 %v35, 4294901760
    %560 = vmatmul.mubr.f32.gmra.mrb[0].mxu0 %v559
    %v561 = vpop.f32.mrb[0].mxu0
    %v562 = vadd.f32 %v481, %v561
    %v563 = vpop.f32.mrb[0].mxu0
    %564 = vdwg.mxu0
    %vm565 = vcmask 31744
    %v566 = vsel %vm565, %v556, -inf
    %567 = vmax.xlane.f32.xlu0 %v566
    %v568 = vpop.xlane.xlu0 %567
    %v569 = vsel %vm565, %v562, -inf
    %570 = vmax.xlane.f32.xlu0 %v569
    %v571 = vpop.xlane.xlu0 %570
    %v572 = vsub.f32 %v556, %v568
    %v573 = vsub.f32 %v562, %v571
    %v574 = vmul.f32 %v572, 1.442695
    %v575 = vpow.pop %v574
    %v576 = vmul.f32 %v573, 1.442695
    %v577 = vpow.pop %v576
    %v578 = vsel %vm565, %v575, 0.0
    %579 = vadd.xlane.f32.xlu0 %v578
    %v580 = vpop.xlane.xlu0 %579
    %v581 = vsel %vm565, %v577, 0.0
    %582 = vadd.xlane.f32.xlu0 %v581
    %v583 = vpop.xlane.xlu0 %582
    %v584 = vrcp.pop %v580
    %v585 = vmul.f32 %v575, %v584
    %v586 = vrcp.pop %v583
    %v587 = vmul.f32 %v577, %v586
    %v588 = vld [vmem:[%s2] sm:$0xff]
    %v589 = vld [vmem:[%s2 + $0x8] sm:$0xff]
    %v590 = vld [vmem:[%s2 + $0x10] sm:$0xff]
    %v591 = vld [vmem:[%s2 + $0x18] sm:$0xff]
    %592 = vmatprep.subr.mxu0 0.0
    %v593 = vand.u32 %v588, 4294901760
    %594 = vmatpush1.msra.mxu0 %v593
    %595 = vmatprep.subr.mxu0 0.0
    %v596 = vand.u32 %v589, 4294901760
    %597 = vmatpush1.msra.mxu0 %v596
    %598 = vmatprep.subr.mxu0 0.0
    %v599 = vand.u32 %v590, 4294901760
    %600 = vmatpush1.msra.mxu0 %v599
    %601 = vmatprep.subr.mxu0 0.0
    %v602 = vand.u32 %v591, 4294901760
    %603 = vmatpush1.msra.mxu0 %v602
    %604 = vmatprep.subr.mxu0 0.0
    %605 = vmatpush1.msra.mxu0 0.0
    %606 = vmatprep.subr.mxu0 0.0
    %607 = vmatpush1.msra.mxu0 0.0
    %608 = vmatprep.subr.mxu0 0.0
    %609 = vmatpush1.msra.mxu0 0.0
    %610 = vmatprep.subr.mxu0 0.0
    %611 = vmatpush1.msra.mxu0 0.0
    %612 = vmatprep.subr.mxu0 0.0
    %613 = vmatpush1.msra.mxu0 0.0
    %614 = vmatprep.subr.mxu0 0.0
    %615 = vmatpush1.msra.mxu0 0.0
    %616 = vmatprep.subr.mxu0 0.0
    %617 = vmatpush1.msra.mxu0 0.0
    %618 = vmatprep.subr.mxu0 0.0
    %619 = vmatpush1.msra.mxu0 0.0
    %620 = vmatprep.subr.mxu0 0.0
    %621 = vmatpush1.msra.mxu0 0.0
    %622 = vmatprep.subr.mxu0 0.0
    %623 = vmatpush1.msra.mxu0 0.0
    %624 = vmatprep.subr.mxu0 0.0
    %625 = vmatpush1.msra.mxu0 0.0
    %626 = vmatprep.subr.mxu0 0.0
    %627 = vmatpush1.msra.mxu0 0.0
    %628 = vmatprep.subr.mxu0 0.0
    %629 = vmatpush1.msra.mxu0 0.0
    %630 = vmatprep.subr.mxu0 0.0
    %631 = vmatpush1.msra.mxu0 0.0
    %632 = vmatprep.subr.mxu0 0.0
    %633 = vmatpush1.msra.mxu0 0.0
    %634 = vmatprep.subr.mxu0 0.0
    %635 = vmatpush1.msra.mxu0 0.0
    %636 = vmatprep.subr.mxu0 0.0
    %637 = vmatpush1.msra.mxu0 0.0
    %638 = vmatprep.subr.mxu0 0.0
    %639 = vmatpush1.msra.mxu0 0.0
    %640 = vmatprep.subr.mxu0 0.0
    %641 = vmatpush1.msra.mxu0 0.0
    %642 = vmatprep.subr.mxu0 0.0
    %643 = vmatpush1.msra.mxu0 0.0
    %644 = vmatprep.subr.mxu0 0.0
    %645 = vmatpush1.msra.mxu0 0.0
    %646 = vmatprep.subr.mxu0 0.0
    %647 = vmatpush1.msra.mxu0 0.0
    %648 = vmatprep.subr.mxu0 0.0
    %649 = vmatpush1.msra.mxu0 0.0
    %650 = vmatprep.subr.mxu0 0.0
    %651 = vmatpush1.msra.mxu0 0.0
    %652 = vmatprep.subr.mxu0 0.0
    %653 = vmatpush1.msra.mxu0 0.0
    %654 = vmatprep.subr.mxu0 0.0
    %655 = vmatpush1.msra.mxu0 0.0
    %656 = vmatprep.subr.mxu0 0.0
    %657 = vmatpush1.msra.mxu0 0.0
    %658 = vmatprep.subr.mxu0 0.0
    %659 = vmatpush1.msra.mxu0 0.0
    %660 = vmatprep.mubr.f32.mxu0 0.0
    %v661 = vand.u32 %v32, 4294901760
    %v662 = vsub.f32 %v32, %v661
    %v663 = vand.u32 %v662, 4294901760
    %v664 = vsub.f32 %v662, %v663
    %v665 = vand.u32 %v664, 4294901760
    %666 = vmatmul.mubr.f32.gmra.mrb[0].mxu0 %v665
    %v667 = vpop.f32.mrb[0].mxu0
    %v668 = vadd.f32 0.0, %v667
    %v669 = vpop.f32.mrb[0].mxu0
    %670 = vmatprep.mubr.f32.mxu0 0.0
    %v671 = vand.u32 %v35, 4294901760
    %v672 = vsub.f32 %v35, %v671
    %v673 = vand.u32 %v672, 4294901760
    %v674 = vsub.f32 %v672, %v673
    %v675 = vand.u32 %v674, 4294901760
    %676 = vmatmul.mubr.f32.gmra.mrb[0].mxu0 %v675
    %v677 = vpop.f32.mrb[0].mxu0
    %v678 = vadd.f32 0.0, %v677
    %v679 = vpop.f32.mrb[0].mxu0
    %680 = vdwg.mxu0
    %681 = vmatprep.subr.mxu0 0.0
    %v682 = vand.u32 %v588, 4294901760
    %v683 = vsub.f32 %v588, %v682
    %v684 = vand.u32 %v683, 4294901760
    %v685 = vsub.f32 %v683, %v684
    %v686 = vand.u32 %v685, 4294901760
    %687 = vmatpush1.msra.mxu0 %v686
    %688 = vmatprep.subr.mxu0 0.0
    %v689 = vand.u32 %v589, 4294901760
    %v690 = vsub.f32 %v589, %v689
    %v691 = vand.u32 %v690, 4294901760
    %v692 = vsub.f32 %v690, %v691
    %v693 = vand.u32 %v692, 4294901760
    %694 = vmatpush1.msra.mxu0 %v693
    %695 = vmatprep.subr.mxu0 0.0
    %v696 = vand.u32 %v590, 4294901760
    %v697 = vsub.f32 %v590, %v696
    %v698 = vand.u32 %v697, 4294901760
    %v699 = vsub.f32 %v697, %v698
    %v700 = vand.u32 %v699, 4294901760
    %701 = vmatpush1.msra.mxu0 %v700
    %702 = vmatprep.subr.mxu0 0.0
    %v703 = vand.u32 %v591, 4294901760
    %v704 = vsub.f32 %v591, %v703
    %v705 = vand.u32 %v704, 4294901760
    %v706 = vsub.f32 %v704, %v705
    %v707 = vand.u32 %v706, 4294901760
    %708 = vmatpush1.msra.mxu0 %v707
    %709 = vmatprep.subr.mxu0 0.0
    %710 = vmatpush1.msra.mxu0 0.0
    %711 = vmatprep.subr.mxu0 0.0
    %712 = vmatpush1.msra.mxu0 0.0
    %713 = vmatprep.subr.mxu0 0.0
    %714 = vmatpush1.msra.mxu0 0.0
    %715 = vmatprep.subr.mxu0 0.0
    %716 = vmatpush1.msra.mxu0 0.0
    %717 = vmatprep.subr.mxu0 0.0
    %718 = vmatpush1.msra.mxu0 0.0
    %719 = vmatprep.subr.mxu0 0.0
    %720 = vmatpush1.msra.mxu0 0.0
    %721 = vmatprep.subr.mxu0 0.0
    %722 = vmatpush1.msra.mxu0 0.0
    %723 = vmatprep.subr.mxu0 0.0
    %724 = vmatpush1.msra.mxu0 0.0
    %725 = vmatprep.subr.mxu0 0.0
    %726 = vmatpush1.msra.mxu0 0.0
    %727 = vmatprep.subr.mxu0 0.0
    %728 = vmatpush1.msra.mxu0 0.0
    %729 = vmatprep.subr.mxu0 0.0
    %730 = vmatpush1.msra.mxu0 0.0
    %731 = vmatprep.subr.mxu0 0.0
    %732 = vmatpush1.msra.mxu0 0.0
    %733 = vmatprep.subr.mxu0 0.0
    %734 = vmatpush1.msra.mxu0 0.0
    %735 = vmatprep.subr.mxu0 0.0
    %736 = vmatpush1.msra.mxu0 0.0
    %737 = vmatprep.subr.mxu0 0.0
    %738 = vmatpush1.msra.mxu0 0.0
    %739 = vmatprep.subr.mxu0 0.0
    %740 = vmatpush1.msra.mxu0 0.0
    %741 = vmatprep.subr.mxu0 0.0
    %742 = vmatpush1.msra.mxu0 0.0
    %743 = vmatprep.subr.mxu0 0.0
    %744 = vmatpush1.msra.mxu0 0.0
    %745 = vmatprep.subr.mxu0 0.0
    %746 = vmatpush1.msra.mxu0 0.0
    %747 = vmatprep.subr.mxu0 0.0
    %748 = vmatpush1.msra.mxu0 0.0
    %749 = vmatprep.subr.mxu0 0.0
    %750 = vmatpush1.msra.mxu0 0.0
    %751 = vmatprep.subr.mxu0 0.0
    %752 = vmatpush1.msra.mxu0 0.0
    %753 = vmatprep.subr.mxu0 0.0
    %754 = vmatpush1.msra.mxu0 0.0
    %755 = vmatprep.subr.mxu0 0.0
    %756 = vmatpush1.msra.mxu0 0.0
    %757 = vmatprep.subr.mxu0 0.0
    %758 = vmatpush1.msra.mxu0 0.0
    %759 = vmatprep.subr.mxu0 0.0
    %760 = vmatpush1.msra.mxu0 0.0
    %761 = vmatprep.subr.mxu0 0.0
    %762 = vmatpush1.msra.mxu0 0.0
    %763 = vmatprep.subr.mxu0 0.0
    %764 = vmatpush1.msra.mxu0 0.0
    %765 = vmatprep.mubr.f32.mxu0 0.0
    %v766 = vand.u32 %v32, 4294901760
    %767 = vmatmul.mubr.f32.gmra.mrb[0].mxu0 %v766
    %v768 = vpop.f32.mrb[0].mxu0
    %v769 = vadd.f32 %v668, %v768
    %v770 = vpop.f32.mrb[0].mxu0
    %771 = vmatprep.mubr.f32.mxu0 0.0
    %v772 = vand.u32 %v35, 4294901760
    %773 = vmatmul.mubr.f32.gmra.mrb[0].mxu0 %v772
    %v774 = vpop.f32.mrb[0].mxu0
    %v775 = vadd.f32 %v678, %v774
    %v776 = vpop.f32.mrb[0].mxu0
    %777 = vdwg.mxu0
    %778 = vmatprep.subr.mxu0 0.0
    %v779 = vand.u32 %v588, 4294901760
    %v780 = vsub.f32 %v588, %v779
    %781 = vmatpush1.msra.mxu0 %v780
    %782 = vmatprep.subr.mxu0 0.0
    %v783 = vand.u32 %v589, 4294901760
    %v784 = vsub.f32 %v589, %v783
    %785 = vmatpush1.msra.mxu0 %v784
    %786 = vmatprep.subr.mxu0 0.0
    %v787 = vand.u32 %v590, 4294901760
    %v788 = vsub.f32 %v590, %v787
    %789 = vmatpush1.msra.mxu0 %v788
    %790 = vmatprep.subr.mxu0 0.0
    %v791 = vand.u32 %v591, 4294901760
    %v792 = vsub.f32 %v591, %v791
    %793 = vmatpush1.msra.mxu0 %v792
    %794 = vmatprep.subr.mxu0 0.0
    %795 = vmatpush1.msra.mxu0 0.0
    %796 = vmatprep.subr.mxu0 0.0
    %797 = vmatpush1.msra.mxu0 0.0
    %798 = vmatprep.subr.mxu0 0.0
    %799 = vmatpush1.msra.mxu0 0.0
    %800 = vmatprep.subr.mxu0 0.0
    %801 = vmatpush1.msra.mxu0 0.0
    %802 = vmatprep.subr.mxu0 0.0
    %803 = vmatpush1.msra.mxu0 0.0
    %804 = vmatprep.subr.mxu0 0.0
    %805 = vmatpush1.msra.mxu0 0.0
    %806 = vmatprep.subr.mxu0 0.0
    %807 = vmatpush1.msra.mxu0 0.0
    %808 = vmatprep.subr.mxu0 0.0
    %809 = vmatpush1.msra.mxu0 0.0
    %810 = vmatprep.subr.mxu0 0.0
    %811 = vmatpush1.msra.mxu0 0.0
    %812 = vmatprep.subr.mxu0 0.0
    %813 = vmatpush1.msra.mxu0 0.0
    %814 = vmatprep.subr.mxu0 0.0
    %815 = vmatpush1.msra.mxu0 0.0
    %816 = vmatprep.subr.mxu0 0.0
    %817 = vmatpush1.msra.mxu0 0.0
    %818 = vmatprep.subr.mxu0 0.0
    %819 = vmatpush1.msra.mxu0 0.0
    %820 = vmatprep.subr.mxu0 0.0
    %821 = vmatpush1.msra.mxu0 0.0
    %822 = vmatprep.subr.mxu0 0.0
    %823 = vmatpush1.msra.mxu0 0.0
    %824 = vmatprep.subr.mxu0 0.0
    %825 = vmatpush1.msra.mxu0 0.0
    %826 = vmatprep.subr.mxu0 0.0
    %827 = vmatpush1.msra.mxu0 0.0
    %828 = vmatprep.subr.mxu0 0.0
    %829 = vmatpush1.msra.mxu0 0.0
    %830 = vmatprep.subr.mxu0 0.0
    %831 = vmatpush1.msra.mxu0 0.0
    %832 = vmatprep.subr.mxu0 0.0
    %833 = vmatpush1.msra.mxu0 0.0
    %834 = vmatprep.subr.mxu0 0.0
    %835 = vmatpush1.msra.mxu0 0.0
    %836 = vmatprep.subr.mxu0 0.0
    %837 = vmatpush1.msra.mxu0 0.0
    %838 = vmatprep.subr.mxu0 0.0
    %839 = vmatpush1.msra.mxu0 0.0
    %840 = vmatprep.subr.mxu0 0.0
    %841 = vmatpush1.msra.mxu0 0.0
    %842 = vmatprep.subr.mxu0 0.0
    %843 = vmatpush1.msra.mxu0 0.0
    %844 = vmatprep.subr.mxu0 0.0
    %845 = vmatpush1.msra.mxu0 0.0
    %846 = vmatprep.subr.mxu0 0.0
    %847 = vmatpush1.msra.mxu0 0.0
    %848 = vmatprep.subr.mxu0 0.0
    %849 = vmatpush1.msra.mxu0 0.0
    %850 = vmatprep.mubr.f32.mxu0 0.0
    %v851 = vand.u32 %v32, 4294901760
    %v852 = vsub.f32 %v32, %v851
    %853 = vmatmul.mubr.f32.gmra.mrb[0].mxu0 %v852
    %v854 = vpop.f32.mrb[0].mxu0
    %v855 = vadd.f32 %v769, %v854
    %v856 = vpop.f32.mrb[0].mxu0
    %857 = vmatprep.mubr.f32.mxu0 0.0
    %v858 = vand.u32 %v35, 4294901760
    %v859 = vsub.f32 %v35, %v858
    %860 = vmatmul.mubr.f32.gmra.mrb[0].mxu0 %v859
    %v861 = vpop.f32.mrb[0].mxu0
    %v862 = vadd.f32 %v775, %v861
    %v863 = vpop.f32.mrb[0].mxu0
    %864 = vdwg.mxu0
    %865 = vmatprep.subr.mxu0 0.0
    %v866 = vand.u32 %v588, 4294901760
    %867 = vmatpush1.msra.mxu0 %v866
    %868 = vmatprep.subr.mxu0 0.0
    %v869 = vand.u32 %v589, 4294901760
    %870 = vmatpush1.msra.mxu0 %v869
    %871 = vmatprep.subr.mxu0 0.0
    %v872 = vand.u32 %v590, 4294901760
    %873 = vmatpush1.msra.mxu0 %v872
    %874 = vmatprep.subr.mxu0 0.0
    %v875 = vand.u32 %v591, 4294901760
    %876 = vmatpush1.msra.mxu0 %v875
    %877 = vmatprep.subr.mxu0 0.0
    %878 = vmatpush1.msra.mxu0 0.0
    %879 = vmatprep.subr.mxu0 0.0
    %880 = vmatpush1.msra.mxu0 0.0
    %881 = vmatprep.subr.mxu0 0.0
    %882 = vmatpush1.msra.mxu0 0.0
    %883 = vmatprep.subr.mxu0 0.0
    %884 = vmatpush1.msra.mxu0 0.0
    %885 = vmatprep.subr.mxu0 0.0
    %886 = vmatpush1.msra.mxu0 0.0
    %887 = vmatprep.subr.mxu0 0.0
    %888 = vmatpush1.msra.mxu0 0.0
    %889 = vmatprep.subr.mxu0 0.0
    %890 = vmatpush1.msra.mxu0 0.0
    %891 = vmatprep.subr.mxu0 0.0
    %892 = vmatpush1.msra.mxu0 0.0
    %893 = vmatprep.subr.mxu0 0.0
    %894 = vmatpush1.msra.mxu0 0.0
    %895 = vmatprep.subr.mxu0 0.0
    %896 = vmatpush1.msra.mxu0 0.0
    %897 = vmatprep.subr.mxu0 0.0
    %898 = vmatpush1.msra.mxu0 0.0
    %899 = vmatprep.subr.mxu0 0.0
    %900 = vmatpush1.msra.mxu0 0.0
    %901 = vmatprep.subr.mxu0 0.0
    %902 = vmatpush1.msra.mxu0 0.0
    %903 = vmatprep.subr.mxu0 0.0
    %904 = vmatpush1.msra.mxu0 0.0
    %905 = vmatprep.subr.mxu0 0.0
    %906 = vmatpush1.msra.mxu0 0.0
    %907 = vmatprep.subr.mxu0 0.0
    %908 = vmatpush1.msra.mxu0 0.0
    %909 = vmatprep.subr.mxu0 0.0
    %910 = vmatpush1.msra.mxu0 0.0
    %911 = vmatprep.subr.mxu0 0.0
    %912 = vmatpush1.msra.mxu0 0.0
    %913 = vmatprep.subr.mxu0 0.0
    %914 = vmatpush1.msra.mxu0 0.0
    %915 = vmatprep.subr.mxu0 0.0
    %916 = vmatpush1.msra.mxu0 0.0
    %917 = vmatprep.subr.mxu0 0.0
    %918 = vmatpush1.msra.mxu0 0.0
    %919 = vmatprep.subr.mxu0 0.0
    %920 = vmatpush1.msra.mxu0 0.0
    %921 = vmatprep.subr.mxu0 0.0
    %922 = vmatpush1.msra.mxu0 0.0
    %923 = vmatprep.subr.mxu0 0.0
    %924 = vmatpush1.msra.mxu0 0.0
    %925 = vmatprep.subr.mxu0 0.0
    %926 = vmatpush1.msra.mxu0 0.0
    %927 = vmatprep.subr.mxu0 0.0
    %928 = vmatpush1.msra.mxu0 0.0
    %929 = vmatprep.subr.mxu0 0.0
    %930 = vmatpush1.msra.mxu0 0.0
    %931 = vmatprep.subr.mxu0 0.0
    %932 = vmatpush1.msra.mxu0 0.0
    %933 = vmatprep.mubr.f32.mxu0 0.0
    %v934 = vand.u32 %v32, 4294901760
    %v935 = vsub.f32 %v32, %v934
    %v936 = vand.u32 %v935, 4294901760
    %937 = vmatmul.mubr.f32.gmra.mrb[0].mxu0 %v936
    %v938 = vpop.f32.mrb[0].mxu0
    %v939 = vadd.f32 %v855, %v938
    %v940 = vpop.f32.mrb[0].mxu0
    %941 = vmatprep.mubr.f32.mxu0 0.0
    %v942 = vand.u32 %v35, 4294901760
    %v943 = vsub.f32 %v35, %v942
    %v944 = vand.u32 %v943, 4294901760
    %945 = vmatmul.mubr.f32.gmra.mrb[0].mxu0 %v944
    %v946 = vpop.f32.mrb[0].mxu0
    %v947 = vadd.f32 %v862, %v946
    %v948 = vpop.f32.mrb[0].mxu0
    %949 = vdwg.mxu0
    %950 = vmatprep.subr.mxu0 0.0
    %v951 = vand.u32 %v588, 4294901760
    %v952 = vsub.f32 %v588, %v951
    %v953 = vand.u32 %v952, 4294901760
    %954 = vmatpush1.msra.mxu0 %v953
    %955 = vmatprep.subr.mxu0 0.0
    %v956 = vand.u32 %v589, 4294901760
    %v957 = vsub.f32 %v589, %v956
    %v958 = vand.u32 %v957, 4294901760
    %959 = vmatpush1.msra.mxu0 %v958
    %960 = vmatprep.subr.mxu0 0.0
    %v961 = vand.u32 %v590, 4294901760
    %v962 = vsub.f32 %v590, %v961
    %v963 = vand.u32 %v962, 4294901760
    %964 = vmatpush1.msra.mxu0 %v963
    %965 = vmatprep.subr.mxu0 0.0
    %v966 = vand.u32 %v591, 4294901760
    %v967 = vsub.f32 %v591, %v966
    %v968 = vand.u32 %v967, 4294901760
    %969 = vmatpush1.msra.mxu0 %v968
    %970 = vmatprep.subr.mxu0 0.0
    %971 = vmatpush1.msra.mxu0 0.0
    %972 = vmatprep.subr.mxu0 0.0
    %973 = vmatpush1.msra.mxu0 0.0
    %974 = vmatprep.subr.mxu0 0.0
    %975 = vmatpush1.msra.mxu0 0.0
    %976 = vmatprep.subr.mxu0 0.0
    %977 = vmatpush1.msra.mxu0 0.0
    %978 = vmatprep.subr.mxu0 0.0
    %979 = vmatpush1.msra.mxu0 0.0
    %980 = vmatprep.subr.mxu0 0.0
    %981 = vmatpush1.msra.mxu0 0.0
    %982 = vmatprep.subr.mxu0 0.0
    %983 = vmatpush1.msra.mxu0 0.0
    %984 = vmatprep.subr.mxu0 0.0
    %985 = vmatpush1.msra.mxu0 0.0
    %986 = vmatprep.subr.mxu0 0.0
    %987 = vmatpush1.msra.mxu0 0.0
    %988 = vmatprep.subr.mxu0 0.0
    %989 = vmatpush1.msra.mxu0 0.0
    %990 = vmatprep.subr.mxu0 0.0
    %991 = vmatpush1.msra.mxu0 0.0
    %992 = vmatprep.subr.mxu0 0.0
    %993 = vmatpush1.msra.mxu0 0.0
    %994 = vmatprep.subr.mxu0 0.0
    %995 = vmatpush1.msra.mxu0 0.0
    %996 = vmatprep.subr.mxu0 0.0
    %997 = vmatpush1.msra.mxu0 0.0
    %998 = vmatprep.subr.mxu0 0.0
    %999 = vmatpush1.msra.mxu0 0.0
    %1000 = vmatprep.subr.mxu0 0.0
    %1001 = vmatpush1.msra.mxu0 0.0
    %1002 = vmatprep.subr.mxu0 0.0
    %1003 = vmatpush1.msra.mxu0 0.0
    %1004 = vmatprep.subr.mxu0 0.0
    %1005 = vmatpush1.msra.mxu0 0.0
    %1006 = vmatprep.subr.mxu0 0.0
    %1007 = vmatpush1.msra.mxu0 0.0
    %1008 = vmatprep.subr.mxu0 0.0
    %1009 = vmatpush1.msra.mxu0 0.0
    %1010 = vmatprep.subr.mxu0 0.0
    %1011 = vmatpush1.msra.mxu0 0.0
    %1012 = vmatprep.subr.mxu0 0.0
    %1013 = vmatpush1.msra.mxu0 0.0
    %1014 = vmatprep.subr.mxu0 0.0
    %1015 = vmatpush1.msra.mxu0 0.0
    %1016 = vmatprep.subr.mxu0 0.0
    %1017 = vmatpush1.msra.mxu0 0.0
    %1018 = vmatprep.subr.mxu0 0.0
    %1019 = vmatpush1.msra.mxu0 0.0
    %1020 = vmatprep.subr.mxu0 0.0
    %1021 = vmatpush1.msra.mxu0 0.0
    %1022 = vmatprep.subr.mxu0 0.0
    %1023 = vmatpush1.msra.mxu0 0.0
    %1024 = vmatprep.subr.mxu0 0.0
    %1025 = vmatpush1.msra.mxu0 0.0
    %1026 = vmatprep.mubr.f32.mxu0 0.0
    %v1027 = vand.u32 %v32, 4294901760
    %1028 = vmatmul.mubr.f32.gmra.mrb[0].mxu0 %v1027
    %v1029 = vpop.f32.mrb[0].mxu0
    %v1030 = vadd.f32 %v939, %v1029
    %v1031 = vpop.f32.mrb[0].mxu0
    %1032 = vmatprep.mubr.f32.mxu0 0.0
    %v1033 = vand.u32 %v35, 4294901760
    %1034 = vmatmul.mubr.f32.gmra.mrb[0].mxu0 %v1033
    %v1035 = vpop.f32.mrb[0].mxu0
    %v1036 = vadd.f32 %v947, %v1035
    %v1037 = vpop.f32.mrb[0].mxu0
    %1038 = vdwg.mxu0
    %1039 = vmatprep.subr.mxu0 0.0
    %v1040 = vand.u32 %v588, 4294901760
    %1041 = vmatpush1.msra.mxu0 %v1040
    %1042 = vmatprep.subr.mxu0 0.0
    %v1043 = vand.u32 %v589, 4294901760
    %1044 = vmatpush1.msra.mxu0 %v1043
    %1045 = vmatprep.subr.mxu0 0.0
    %v1046 = vand.u32 %v590, 4294901760
    %1047 = vmatpush1.msra.mxu0 %v1046
    %1048 = vmatprep.subr.mxu0 0.0
    %v1049 = vand.u32 %v591, 4294901760
    %1050 = vmatpush1.msra.mxu0 %v1049
    %1051 = vmatprep.subr.mxu0 0.0
    %1052 = vmatpush1.msra.mxu0 0.0
    %1053 = vmatprep.subr.mxu0 0.0
    %1054 = vmatpush1.msra.mxu0 0.0
    %1055 = vmatprep.subr.mxu0 0.0
    %1056 = vmatpush1.msra.mxu0 0.0
    %1057 = vmatprep.subr.mxu0 0.0
    %1058 = vmatpush1.msra.mxu0 0.0
    %1059 = vmatprep.subr.mxu0 0.0
    %1060 = vmatpush1.msra.mxu0 0.0
    %1061 = vmatprep.subr.mxu0 0.0
    %1062 = vmatpush1.msra.mxu0 0.0
    %1063 = vmatprep.subr.mxu0 0.0
    %1064 = vmatpush1.msra.mxu0 0.0
    %1065 = vmatprep.subr.mxu0 0.0
    %1066 = vmatpush1.msra.mxu0 0.0
    %1067 = vmatprep.subr.mxu0 0.0
    %1068 = vmatpush1.msra.mxu0 0.0
    %1069 = vmatprep.subr.mxu0 0.0
    %1070 = vmatpush1.msra.mxu0 0.0
    %1071 = vmatprep.subr.mxu0 0.0
    %1072 = vmatpush1.msra.mxu0 0.0
    %1073 = vmatprep.subr.mxu0 0.0
    %1074 = vmatpush1.msra.mxu0 0.0
    %1075 = vmatprep.subr.mxu0 0.0
    %1076 = vmatpush1.msra.mxu0 0.0
    %1077 = vmatprep.subr.mxu0 0.0
    %1078 = vmatpush1.msra.mxu0 0.0
    %1079 = vmatprep.subr.mxu0 0.0
    %1080 = vmatpush1.msra.mxu0 0.0
    %1081 = vmatprep.subr.mxu0 0.0
    %1082 = vmatpush1.msra.mxu0 0.0
    %1083 = vmatprep.subr.mxu0 0.0
    %1084 = vmatpush1.msra.mxu0 0.0
    %1085 = vmatprep.subr.mxu0 0.0
    %1086 = vmatpush1.msra.mxu0 0.0
    %1087 = vmatprep.subr.mxu0 0.0
    %1088 = vmatpush1.msra.mxu0 0.0
    %1089 = vmatprep.subr.mxu0 0.0
    %1090 = vmatpush1.msra.mxu0 0.0
    %1091 = vmatprep.subr.mxu0 0.0
    %1092 = vmatpush1.msra.mxu0 0.0
    %1093 = vmatprep.subr.mxu0 0.0
    %1094 = vmatpush1.msra.mxu0 0.0
    %1095 = vmatprep.subr.mxu0 0.0
    %1096 = vmatpush1.msra.mxu0 0.0
    %1097 = vmatprep.subr.mxu0 0.0
    %1098 = vmatpush1.msra.mxu0 0.0
    %1099 = vmatprep.subr.mxu0 0.0
    %1100 = vmatpush1.msra.mxu0 0.0
    %1101 = vmatprep.subr.mxu0 0.0
    %1102 = vmatpush1.msra.mxu0 0.0
    %1103 = vmatprep.subr.mxu0 0.0
    %1104 = vmatpush1.msra.mxu0 0.0
    %1105 = vmatprep.subr.mxu0 0.0
    %1106 = vmatpush1.msra.mxu0 0.0
    %1107 = vmatprep.mubr.f32.mxu0 0.0
    %v1108 = vand.u32 %v32, 4294901760
    %1109 = vmatmul.mubr.f32.gmra.mrb[0].mxu0 %v1108
    %v1110 = vpop.f32.mrb[0].mxu0
    %v1111 = vadd.f32 %v1030, %v1110
    %v1112 = vpop.f32.mrb[0].mxu0
    %1113 = vmatprep.mubr.f32.mxu0 0.0
    %v1114 = vand.u32 %v35, 4294901760
    %1115 = vmatmul.mubr.f32.gmra.mrb[0].mxu0 %v1114
    %v1116 = vpop.f32.mrb[0].mxu0
    %v1117 = vadd.f32 %v1036, %v1116
    %v1118 = vpop.f32.mrb[0].mxu0
    %1119 = vdwg.mxu0
    %v1120 = vld [vmem:[%s4] sm:$0xff]
    %v1121 = vld [vmem:[%s4 + $0x8] sm:$0xff]
    %v1122 = vsub.f32 %v1111, %v1120
    %v1123 = vsub.f32 %v1117, %v1121
    %v1124 = vld [vmem:[%s3] sm:$0xf]
    %v1126 = vsel %vm565, %v585, 0
    %v1129 = vsel %vm565, %v587, 0
    %vm1131 = vcmask 1043456
    %v1133 = vsel %vm1131, %v1124, 0
    %1135 = vmatprep.subr.mxu0 0.0
    %v1136 = vand.u32 %v1133, 4294901760
    %1137 = vmatpush1.msra.mxu0 %v1136
    %1138 = vmatprep.subr.mxu0 0.0
    %1139 = vmatpush1.msra.mxu0 0.0
    %1140 = vmatprep.subr.mxu0 0.0
    %1141 = vmatpush1.msra.mxu0 0.0
    %1142 = vmatprep.subr.mxu0 0.0
    %1143 = vmatpush1.msra.mxu0 0.0
    %1144 = vmatprep.subr.mxu0 0.0
    %1145 = vmatpush1.msra.mxu0 0.0
    %1146 = vmatprep.subr.mxu0 0.0
    %1147 = vmatpush1.msra.mxu0 0.0
    %1148 = vmatprep.subr.mxu0 0.0
    %1149 = vmatpush1.msra.mxu0 0.0
    %1150 = vmatprep.subr.mxu0 0.0
    %1151 = vmatpush1.msra.mxu0 0.0
    %1152 = vmatprep.subr.mxu0 0.0
    %1153 = vmatpush1.msra.mxu0 0.0
    %1154 = vmatprep.subr.mxu0 0.0
    %1155 = vmatpush1.msra.mxu0 0.0
    %1156 = vmatprep.subr.mxu0 0.0
    %1157 = vmatpush1.msra.mxu0 0.0
    %1158 = vmatprep.subr.mxu0 0.0
    %1159 = vmatpush1.msra.mxu0 0.0
    %1160 = vmatprep.subr.mxu0 0.0
    %1161 = vmatpush1.msra.mxu0 0.0
    %1162 = vmatprep.subr.mxu0 0.0
    %1163 = vmatpush1.msra.mxu0 0.0
    %1164 = vmatprep.subr.mxu0 0.0
    %1165 = vmatpush1.msra.mxu0 0.0
    %1166 = vmatprep.subr.mxu0 0.0
    %1167 = vmatpush1.msra.mxu0 0.0
    %1168 = vmatprep.subr.mxu0 0.0
    %1169 = vmatpush1.msra.mxu0 0.0
    %1170 = vmatprep.subr.mxu0 0.0
    %1171 = vmatpush1.msra.mxu0 0.0
    %1172 = vmatprep.subr.mxu0 0.0
    %1173 = vmatpush1.msra.mxu0 0.0
    %1174 = vmatprep.subr.mxu0 0.0
    %1175 = vmatpush1.msra.mxu0 0.0
    %1176 = vmatprep.subr.mxu0 0.0
    %1177 = vmatpush1.msra.mxu0 0.0
    %1178 = vmatprep.subr.mxu0 0.0
    %1179 = vmatpush1.msra.mxu0 0.0
    %1180 = vmatprep.subr.mxu0 0.0
    %1181 = vmatpush1.msra.mxu0 0.0
    %1182 = vmatprep.subr.mxu0 0.0
    %1183 = vmatpush1.msra.mxu0 0.0
    %1184 = vmatprep.subr.mxu0 0.0
    %1185 = vmatpush1.msra.mxu0 0.0
    %1186 = vmatprep.subr.mxu0 0.0
    %1187 = vmatpush1.msra.mxu0 0.0
    %1188 = vmatprep.subr.mxu0 0.0
    %1189 = vmatpush1.msra.mxu0 0.0
    %1190 = vmatprep.subr.mxu0 0.0
    %1191 = vmatpush1.msra.mxu0 0.0
    %1192 = vmatprep.subr.mxu0 0.0
    %1193 = vmatpush1.msra.mxu0 0.0
    %1194 = vmatprep.subr.mxu0 0.0
    %1195 = vmatpush1.msra.mxu0 0.0
    %1196 = vmatprep.subr.mxu0 0.0
    %1197 = vmatpush1.msra.mxu0 0.0
    %1198 = vmatprep.subr.mxu0 0.0
    %1199 = vmatpush1.msra.mxu0 0.0
    %1200 = vmatprep.mubr.f32.mxu0 0.0
    %v1201 = vand.u32 %v1126, 4294901760
    %v1202 = vsub.f32 %v1126, %v1201
    %v1203 = vand.u32 %v1202, 4294901760
    %v1204 = vsub.f32 %v1202, %v1203
    %v1205 = vand.u32 %v1204, 4294901760
    %1206 = vmatmul.mubr.f32.gmra.mrb[0].mxu0 %v1205
    %v1207 = vpop.f32.mrb[0].mxu0
    %v1208 = vadd.f32 0.0, %v1207
    %v1209 = vpop.f32.mrb[0].mxu0
    %1210 = vmatprep.mubr.f32.mxu0 0.0
    %v1211 = vand.u32 %v1129, 4294901760
    %v1212 = vsub.f32 %v1129, %v1211
    %v1213 = vand.u32 %v1212, 4294901760
    %v1214 = vsub.f32 %v1212, %v1213
    %v1215 = vand.u32 %v1214, 4294901760
    %1216 = vmatmul.mubr.f32.gmra.mrb[0].mxu0 %v1215
    %v1217 = vpop.f32.mrb[0].mxu0
    %v1218 = vadd.f32 0.0, %v1217
    %v1219 = vpop.f32.mrb[0].mxu0
    %1220 = vdwg.mxu0
    %1221 = vmatprep.subr.mxu0 0.0
    %v1222 = vand.u32 %v1133, 4294901760
    %v1223 = vsub.f32 %v1133, %v1222
    %v1224 = vand.u32 %v1223, 4294901760
    %v1225 = vsub.f32 %v1223, %v1224
    %v1226 = vand.u32 %v1225, 4294901760
    %1227 = vmatpush1.msra.mxu0 %v1226
    %1228 = vmatprep.subr.mxu0 0.0
    %1229 = vmatpush1.msra.mxu0 0.0
    %1230 = vmatprep.subr.mxu0 0.0
    %1231 = vmatpush1.msra.mxu0 0.0
    %1232 = vmatprep.subr.mxu0 0.0
    %1233 = vmatpush1.msra.mxu0 0.0
    %1234 = vmatprep.subr.mxu0 0.0
    %1235 = vmatpush1.msra.mxu0 0.0
    %1236 = vmatprep.subr.mxu0 0.0
    %1237 = vmatpush1.msra.mxu0 0.0
    %1238 = vmatprep.subr.mxu0 0.0
    %1239 = vmatpush1.msra.mxu0 0.0
    %1240 = vmatprep.subr.mxu0 0.0
    %1241 = vmatpush1.msra.mxu0 0.0
    %1242 = vmatprep.subr.mxu0 0.0
    %1243 = vmatpush1.msra.mxu0 0.0
    %1244 = vmatprep.subr.mxu0 0.0
    %1245 = vmatpush1.msra.mxu0 0.0
    %1246 = vmatprep.subr.mxu0 0.0
    %1247 = vmatpush1.msra.mxu0 0.0
    %1248 = vmatprep.subr.mxu0 0.0
    %1249 = vmatpush1.msra.mxu0 0.0
    %1250 = vmatprep.subr.mxu0 0.0
    %1251 = vmatpush1.msra.mxu0 0.0
    %1252 = vmatprep.subr.mxu0 0.0
    %1253 = vmatpush1.msra.mxu0 0.0
    %1254 = vmatprep.subr.mxu0 0.0
    %1255 = vmatpush1.msra.mxu0 0.0
    %1256 = vmatprep.subr.mxu0 0.0
    %1257 = vmatpush1.msra.mxu0 0.0
    %1258 = vmatprep.subr.mxu0 0.0
    %1259 = vmatpush1.msra.mxu0 0.0
    %1260 = vmatprep.subr.mxu0 0.0
    %1261 = vmatpush1.msra.mxu0 0.0
    %1262 = vmatprep.subr.mxu0 0.0
    %1263 = vmatpush1.msra.mxu0 0.0
    %1264 = vmatprep.subr.mxu0 0.0
    %1265 = vmatpush1.msra.mxu0 0.0
    %1266 = vmatprep.subr.mxu0 0.0
    %1267 = vmatpush1.msra.mxu0 0.0
    %1268 = vmatprep.subr.mxu0 0.0
    %1269 = vmatpush1.msra.mxu0 0.0
    %1270 = vmatprep.subr.mxu0 0.0
    %1271 = vmatpush1.msra.mxu0 0.0
    %1272 = vmatprep.subr.mxu0 0.0
    %1273 = vmatpush1.msra.mxu0 0.0
    %1274 = vmatprep.subr.mxu0 0.0
    %1275 = vmatpush1.msra.mxu0 0.0
    %1276 = vmatprep.subr.mxu0 0.0
    %1277 = vmatpush1.msra.mxu0 0.0
    %1278 = vmatprep.subr.mxu0 0.0
    %1279 = vmatpush1.msra.mxu0 0.0
    %1280 = vmatprep.subr.mxu0 0.0
    %1281 = vmatpush1.msra.mxu0 0.0
    %1282 = vmatprep.subr.mxu0 0.0
    %1283 = vmatpush1.msra.mxu0 0.0
    %1284 = vmatprep.subr.mxu0 0.0
    %1285 = vmatpush1.msra.mxu0 0.0
    %1286 = vmatprep.subr.mxu0 0.0
    %1287 = vmatpush1.msra.mxu0 0.0
    %1288 = vmatprep.subr.mxu0 0.0
    %1289 = vmatpush1.msra.mxu0 0.0
    %1290 = vmatprep.mubr.f32.mxu0 0.0
    %v1291 = vand.u32 %v1126, 4294901760
    %1292 = vmatmul.mubr.f32.gmra.mrb[0].mxu0 %v1291
    %v1293 = vpop.f32.mrb[0].mxu0
    %v1294 = vadd.f32 %v1208, %v1293
    %v1295 = vpop.f32.mrb[0].mxu0
    %1296 = vmatprep.mubr.f32.mxu0 0.0
    %v1297 = vand.u32 %v1129, 4294901760
    %1298 = vmatmul.mubr.f32.gmra.mrb[0].mxu0 %v1297
    %v1299 = vpop.f32.mrb[0].mxu0
    %v1300 = vadd.f32 %v1218, %v1299
    %v1301 = vpop.f32.mrb[0].mxu0
    %1302 = vdwg.mxu0
    %1303 = vmatprep.subr.mxu0 0.0
    %v1304 = vand.u32 %v1133, 4294901760
    %v1305 = vsub.f32 %v1133, %v1304
    %1306 = vmatpush1.msra.mxu0 %v1305
    %1307 = vmatprep.subr.mxu0 0.0
    %1308 = vmatpush1.msra.mxu0 0.0
    %1309 = vmatprep.subr.mxu0 0.0
    %1310 = vmatpush1.msra.mxu0 0.0
    %1311 = vmatprep.subr.mxu0 0.0
    %1312 = vmatpush1.msra.mxu0 0.0
    %1313 = vmatprep.subr.mxu0 0.0
    %1314 = vmatpush1.msra.mxu0 0.0
    %1315 = vmatprep.subr.mxu0 0.0
    %1316 = vmatpush1.msra.mxu0 0.0
    %1317 = vmatprep.subr.mxu0 0.0
    %1318 = vmatpush1.msra.mxu0 0.0
    %1319 = vmatprep.subr.mxu0 0.0
    %1320 = vmatpush1.msra.mxu0 0.0
    %1321 = vmatprep.subr.mxu0 0.0
    %1322 = vmatpush1.msra.mxu0 0.0
    %1323 = vmatprep.subr.mxu0 0.0
    %1324 = vmatpush1.msra.mxu0 0.0
    %1325 = vmatprep.subr.mxu0 0.0
    %1326 = vmatpush1.msra.mxu0 0.0
    %1327 = vmatprep.subr.mxu0 0.0
    %1328 = vmatpush1.msra.mxu0 0.0
    %1329 = vmatprep.subr.mxu0 0.0
    %1330 = vmatpush1.msra.mxu0 0.0
    %1331 = vmatprep.subr.mxu0 0.0
    %1332 = vmatpush1.msra.mxu0 0.0
    %1333 = vmatprep.subr.mxu0 0.0
    %1334 = vmatpush1.msra.mxu0 0.0
    %1335 = vmatprep.subr.mxu0 0.0
    %1336 = vmatpush1.msra.mxu0 0.0
    %1337 = vmatprep.subr.mxu0 0.0
    %1338 = vmatpush1.msra.mxu0 0.0
    %1339 = vmatprep.subr.mxu0 0.0
    %1340 = vmatpush1.msra.mxu0 0.0
    %1341 = vmatprep.subr.mxu0 0.0
    %1342 = vmatpush1.msra.mxu0 0.0
    %1343 = vmatprep.subr.mxu0 0.0
    %1344 = vmatpush1.msra.mxu0 0.0
    %1345 = vmatprep.subr.mxu0 0.0
    %1346 = vmatpush1.msra.mxu0 0.0
    %1347 = vmatprep.subr.mxu0 0.0
    %1348 = vmatpush1.msra.mxu0 0.0
    %1349 = vmatprep.subr.mxu0 0.0
    %1350 = vmatpush1.msra.mxu0 0.0
    %1351 = vmatprep.subr.mxu0 0.0
    %1352 = vmatpush1.msra.mxu0 0.0
    %1353 = vmatprep.subr.mxu0 0.0
    %1354 = vmatpush1.msra.mxu0 0.0
    %1355 = vmatprep.subr.mxu0 0.0
    %1356 = vmatpush1.msra.mxu0 0.0
    %1357 = vmatprep.subr.mxu0 0.0
    %1358 = vmatpush1.msra.mxu0 0.0
    %1359 = vmatprep.subr.mxu0 0.0
    %1360 = vmatpush1.msra.mxu0 0.0
    %1361 = vmatprep.subr.mxu0 0.0
    %1362 = vmatpush1.msra.mxu0 0.0
    %1363 = vmatprep.subr.mxu0 0.0
    %1364 = vmatpush1.msra.mxu0 0.0
    %1365 = vmatprep.subr.mxu0 0.0
    %1366 = vmatpush1.msra.mxu0 0.0
    %1367 = vmatprep.subr.mxu0 0.0
    %1368 = vmatpush1.msra.mxu0 0.0
    %1369 = vmatprep.mubr.f32.mxu0 0.0
    %v1370 = vand.u32 %v1126, 4294901760
    %v1371 = vsub.f32 %v1126, %v1370
    %1372 = vmatmul.mubr.f32.gmra.mrb[0].mxu0 %v1371
    %v1373 = vpop.f32.mrb[0].mxu0
    %v1374 = vadd.f32 %v1294, %v1373
    %v1375 = vpop.f32.mrb[0].mxu0
    %1376 = vmatprep.mubr.f32.mxu0 0.0
    %v1377 = vand.u32 %v1129, 4294901760
    %v1378 = vsub.f32 %v1129, %v1377
    %1379 = vmatmul.mubr.f32.gmra.mrb[0].mxu0 %v1378
    %v1380 = vpop.f32.mrb[0].mxu0
    %v1381 = vadd.f32 %v1300, %v1380
    %v1382 = vpop.f32.mrb[0].mxu0
    %1383 = vdwg.mxu0
    %1384 = vmatprep.subr.mxu0 0.0
    %v1385 = vand.u32 %v1133, 4294901760
    %1386 = vmatpush1.msra.mxu0 %v1385
    %1387 = vmatprep.subr.mxu0 0.0
    %1388 = vmatpush1.msra.mxu0 0.0
    %1389 = vmatprep.subr.mxu0 0.0
    %1390 = vmatpush1.msra.mxu0 0.0
    %1391 = vmatprep.subr.mxu0 0.0
    %1392 = vmatpush1.msra.mxu0 0.0
    %1393 = vmatprep.subr.mxu0 0.0
    %1394 = vmatpush1.msra.mxu0 0.0
    %1395 = vmatprep.subr.mxu0 0.0
    %1396 = vmatpush1.msra.mxu0 0.0
    %1397 = vmatprep.subr.mxu0 0.0
    %1398 = vmatpush1.msra.mxu0 0.0
    %1399 = vmatprep.subr.mxu0 0.0
    %1400 = vmatpush1.msra.mxu0 0.0
    %1401 = vmatprep.subr.mxu0 0.0
    %1402 = vmatpush1.msra.mxu0 0.0
    %1403 = vmatprep.subr.mxu0 0.0
    %1404 = vmatpush1.msra.mxu0 0.0
    %1405 = vmatprep.subr.mxu0 0.0
    %1406 = vmatpush1.msra.mxu0 0.0
    %1407 = vmatprep.subr.mxu0 0.0
    %1408 = vmatpush1.msra.mxu0 0.0
    %1409 = vmatprep.subr.mxu0 0.0
    %1410 = vmatpush1.msra.mxu0 0.0
    %1411 = vmatprep.subr.mxu0 0.0
    %1412 = vmatpush1.msra.mxu0 0.0
    %1413 = vmatprep.subr.mxu0 0.0
    %1414 = vmatpush1.msra.mxu0 0.0
    %1415 = vmatprep.subr.mxu0 0.0
    %1416 = vmatpush1.msra.mxu0 0.0
    %1417 = vmatprep.subr.mxu0 0.0
    %1418 = vmatpush1.msra.mxu0 0.0
    %1419 = vmatprep.subr.mxu0 0.0
    %1420 = vmatpush1.msra.mxu0 0.0
    %1421 = vmatprep.subr.mxu0 0.0
    %1422 = vmatpush1.msra.mxu0 0.0
    %1423 = vmatprep.subr.mxu0 0.0
    %1424 = vmatpush1.msra.mxu0 0.0
    %1425 = vmatprep.subr.mxu0 0.0
    %1426 = vmatpush1.msra.mxu0 0.0
    %1427 = vmatprep.subr.mxu0 0.0
    %1428 = vmatpush1.msra.mxu0 0.0
    %1429 = vmatprep.subr.mxu0 0.0
    %1430 = vmatpush1.msra.mxu0 0.0
    %1431 = vmatprep.subr.mxu0 0.0
    %1432 = vmatpush1.msra.mxu0 0.0
    %1433 = vmatprep.subr.mxu0 0.0
    %1434 = vmatpush1.msra.mxu0 0.0
    %1435 = vmatprep.subr.mxu0 0.0
    %1436 = vmatpush1.msra.mxu0 0.0
    %1437 = vmatprep.subr.mxu0 0.0
    %1438 = vmatpush1.msra.mxu0 0.0
    %1439 = vmatprep.subr.mxu0 0.0
    %1440 = vmatpush1.msra.mxu0 0.0
    %1441 = vmatprep.subr.mxu0 0.0
    %1442 = vmatpush1.msra.mxu0 0.0
    %1443 = vmatprep.subr.mxu0 0.0
    %1444 = vmatpush1.msra.mxu0 0.0
    %1445 = vmatprep.subr.mxu0 0.0
    %1446 = vmatpush1.msra.mxu0 0.0
    %1447 = vmatprep.subr.mxu0 0.0
    %1448 = vmatpush1.msra.mxu0 0.0
    %1449 = vmatprep.mubr.f32.mxu0 0.0
    %v1450 = vand.u32 %v1126, 4294901760
    %v1451 = vsub.f32 %v1126, %v1450
    %v1452 = vand.u32 %v1451, 4294901760
    %1453 = vmatmul.mubr.f32.gmra.mrb[0].mxu0 %v1452
    %v1454 = vpop.f32.mrb[0].mxu0
    %v1455 = vadd.f32 %v1374, %v1454
    %v1456 = vpop.f32.mrb[0].mxu0
    %1457 = vmatprep.mubr.f32.mxu0 0.0
    %v1458 = vand.u32 %v1129, 4294901760
    %v1459 = vsub.f32 %v1129, %v1458
    %v1460 = vand.u32 %v1459, 4294901760
    %1461 = vmatmul.mubr.f32.gmra.mrb[0].mxu0 %v1460
    %v1462 = vpop.f32.mrb[0].mxu0
    %v1463 = vadd.f32 %v1381, %v1462
    %v1464 = vpop.f32.mrb[0].mxu0
    %1465 = vdwg.mxu0
    %1466 = vmatprep.subr.mxu0 0.0
    %v1467 = vand.u32 %v1133, 4294901760
    %v1468 = vsub.f32 %v1133, %v1467
    %v1469 = vand.u32 %v1468, 4294901760
    %1470 = vmatpush1.msra.mxu0 %v1469
    %1471 = vmatprep.subr.mxu0 0.0
    %1472 = vmatpush1.msra.mxu0 0.0
    %1473 = vmatprep.subr.mxu0 0.0
    %1474 = vmatpush1.msra.mxu0 0.0
    %1475 = vmatprep.subr.mxu0 0.0
    %1476 = vmatpush1.msra.mxu0 0.0
    %1477 = vmatprep.subr.mxu0 0.0
    %1478 = vmatpush1.msra.mxu0 0.0
    %1479 = vmatprep.subr.mxu0 0.0
    %1480 = vmatpush1.msra.mxu0 0.0
    %1481 = vmatprep.subr.mxu0 0.0
    %1482 = vmatpush1.msra.mxu0 0.0
    %1483 = vmatprep.subr.mxu0 0.0
    %1484 = vmatpush1.msra.mxu0 0.0
    %1485 = vmatprep.subr.mxu0 0.0
    %1486 = vmatpush1.msra.mxu0 0.0
    %1487 = vmatprep.subr.mxu0 0.0
    %1488 = vmatpush1.msra.mxu0 0.0
    %1489 = vmatprep.subr.mxu0 0.0
    %1490 = vmatpush1.msra.mxu0 0.0
    %1491 = vmatprep.subr.mxu0 0.0
    %1492 = vmatpush1.msra.mxu0 0.0
    %1493 = vmatprep.subr.mxu0 0.0
    %1494 = vmatpush1.msra.mxu0 0.0
    %1495 = vmatprep.subr.mxu0 0.0
    %1496 = vmatpush1.msra.mxu0 0.0
    %1497 = vmatprep.subr.mxu0 0.0
    %1498 = vmatpush1.msra.mxu0 0.0
    %1499 = vmatprep.subr.mxu0 0.0
    %1500 = vmatpush1.msra.mxu0 0.0
    %1501 = vmatprep.subr.mxu0 0.0
    %1502 = vmatpush1.msra.mxu0 0.0
    %1503 = vmatprep.subr.mxu0 0.0
    %1504 = vmatpush1.msra.mxu0 0.0
    %1505 = vmatprep.subr.mxu0 0.0
    %1506 = vmatpush1.msra.mxu0 0.0
    %1507 = vmatprep.subr.mxu0 0.0
    %1508 = vmatpush1.msra.mxu0 0.0
    %1509 = vmatprep.subr.mxu0 0.0
    %1510 = vmatpush1.msra.mxu0 0.0
    %1511 = vmatprep.subr.mxu0 0.0
    %1512 = vmatpush1.msra.mxu0 0.0
    %1513 = vmatprep.subr.mxu0 0.0
    %1514 = vmatpush1.msra.mxu0 0.0
    %1515 = vmatprep.subr.mxu0 0.0
    %1516 = vmatpush1.msra.mxu0 0.0
    %1517 = vmatprep.subr.mxu0 0.0
    %1518 = vmatpush1.msra.mxu0 0.0
    %1519 = vmatprep.subr.mxu0 0.0
    %1520 = vmatpush1.msra.mxu0 0.0
    %1521 = vmatprep.subr.mxu0 0.0
    %1522 = vmatpush1.msra.mxu0 0.0
    %1523 = vmatprep.subr.mxu0 0.0
    %1524 = vmatpush1.msra.mxu0 0.0
    %1525 = vmatprep.subr.mxu0 0.0
    %1526 = vmatpush1.msra.mxu0 0.0
    %1527 = vmatprep.subr.mxu0 0.0
    %1528 = vmatpush1.msra.mxu0 0.0
    %1529 = vmatprep.subr.mxu0 0.0
    %1530 = vmatpush1.msra.mxu0 0.0
    %1531 = vmatprep.subr.mxu0 0.0
    %1532 = vmatpush1.msra.mxu0 0.0
    %1533 = vmatprep.mubr.f32.mxu0 0.0
    %v1534 = vand.u32 %v1126, 4294901760
    %1535 = vmatmul.mubr.f32.gmra.mrb[0].mxu0 %v1534
    %v1536 = vpop.f32.mrb[0].mxu0
    %v1537 = vadd.f32 %v1455, %v1536
    %v1538 = vpop.f32.mrb[0].mxu0
    %1539 = vmatprep.mubr.f32.mxu0 0.0
    %v1540 = vand.u32 %v1129, 4294901760
    %1541 = vmatmul.mubr.f32.gmra.mrb[0].mxu0 %v1540
    %v1542 = vpop.f32.mrb[0].mxu0
    %v1543 = vadd.f32 %v1463, %v1542
    %v1544 = vpop.f32.mrb[0].mxu0
    %1545 = vdwg.mxu0
    %1546 = vmatprep.subr.mxu0 0.0
    %v1547 = vand.u32 %v1133, 4294901760
    %1548 = vmatpush1.msra.mxu0 %v1547
    %1549 = vmatprep.subr.mxu0 0.0
    %1550 = vmatpush1.msra.mxu0 0.0
    %1551 = vmatprep.subr.mxu0 0.0
    %1552 = vmatpush1.msra.mxu0 0.0
    %1553 = vmatprep.subr.mxu0 0.0
    %1554 = vmatpush1.msra.mxu0 0.0
    %1555 = vmatprep.subr.mxu0 0.0
    %1556 = vmatpush1.msra.mxu0 0.0
    %1557 = vmatprep.subr.mxu0 0.0
    %1558 = vmatpush1.msra.mxu0 0.0
    %1559 = vmatprep.subr.mxu0 0.0
    %1560 = vmatpush1.msra.mxu0 0.0
    %1561 = vmatprep.subr.mxu0 0.0
    %1562 = vmatpush1.msra.mxu0 0.0
    %1563 = vmatprep.subr.mxu0 0.0
    %1564 = vmatpush1.msra.mxu0 0.0
    %1565 = vmatprep.subr.mxu0 0.0
    %1566 = vmatpush1.msra.mxu0 0.0
    %1567 = vmatprep.subr.mxu0 0.0
    %1568 = vmatpush1.msra.mxu0 0.0
    %1569 = vmatprep.subr.mxu0 0.0
    %1570 = vmatpush1.msra.mxu0 0.0
    %1571 = vmatprep.subr.mxu0 0.0
    %1572 = vmatpush1.msra.mxu0 0.0
    %1573 = vmatprep.subr.mxu0 0.0
    %1574 = vmatpush1.msra.mxu0 0.0
    %1575 = vmatprep.subr.mxu0 0.0
    %1576 = vmatpush1.msra.mxu0 0.0
    %1577 = vmatprep.subr.mxu0 0.0
    %1578 = vmatpush1.msra.mxu0 0.0
    %1579 = vmatprep.subr.mxu0 0.0
    %1580 = vmatpush1.msra.mxu0 0.0
    %1581 = vmatprep.subr.mxu0 0.0
    %1582 = vmatpush1.msra.mxu0 0.0
    %1583 = vmatprep.subr.mxu0 0.0
    %1584 = vmatpush1.msra.mxu0 0.0
    %1585 = vmatprep.subr.mxu0 0.0
    %1586 = vmatpush1.msra.mxu0 0.0
    %1587 = vmatprep.subr.mxu0 0.0
    %1588 = vmatpush1.msra.mxu0 0.0
    %1589 = vmatprep.subr.mxu0 0.0
    %1590 = vmatpush1.msra.mxu0 0.0
    %1591 = vmatprep.subr.mxu0 0.0
    %1592 = vmatpush1.msra.mxu0 0.0
    %1593 = vmatprep.subr.mxu0 0.0
    %1594 = vmatpush1.msra.mxu0 0.0
    %1595 = vmatprep.subr.mxu0 0.0
    %1596 = vmatpush1.msra.mxu0 0.0
    %1597 = vmatprep.subr.mxu0 0.0
    %1598 = vmatpush1.msra.mxu0 0.0
    %1599 = vmatprep.subr.mxu0 0.0
    %1600 = vmatpush1.msra.mxu0 0.0
    %1601 = vmatprep.subr.mxu0 0.0
    %1602 = vmatpush1.msra.mxu0 0.0
    %1603 = vmatprep.subr.mxu0 0.0
    %1604 = vmatpush1.msra.mxu0 0.0
    %1605 = vmatprep.subr.mxu0 0.0
    %1606 = vmatpush1.msra.mxu0 0.0
    %1607 = vmatprep.subr.mxu0 0.0
    %1608 = vmatpush1.msra.mxu0 0.0
    %1609 = vmatprep.subr.mxu0 0.0
    %1610 = vmatpush1.msra.mxu0 0.0
    %1611 = vmatprep.mubr.f32.mxu0 0.0
    %v1612 = vand.u32 %v1126, 4294901760
    %1613 = vmatmul.mubr.f32.gmra.mrb[0].mxu0 %v1612
    %v1614 = vpop.f32.mrb[0].mxu0
    %v1615 = vadd.f32 %v1537, %v1614
    %v1616 = vpop.f32.mrb[0].mxu0
    %1617 = vmatprep.mubr.f32.mxu0 0.0
    %v1618 = vand.u32 %v1129, 4294901760
    %1619 = vmatmul.mubr.f32.gmra.mrb[0].mxu0 %v1618
    %v1620 = vpop.f32.mrb[0].mxu0
    %v1621 = vadd.f32 %v1543, %v1620
    %v1622 = vpop.f32.mrb[0].mxu0
    %1623 = vdwg.mxu0
    %v1624 = vmul.f32 %v1615, %v1122
    %v1625 = vmul.f32 %v1621, %v1123
    %v1626 = vld [vmem:[%s5] sm:$0xff]
    %v1627 = vld [vmem:[%s5 + $0x8] sm:$0xff]
    %v1628 = vld [vmem:[%s5 + $0x10] sm:$0xff]
    %v1629 = vld [vmem:[%s5 + $0x18] sm:$0xff]
    %v1630 = vld [vmem:[%s5 + $0x20] sm:$0xff]
    %v1631 = vld [vmem:[%s5 + $0x28] sm:$0xff]
    %v1632 = vld [vmem:[%s5 + $0x30] sm:$0xff]
    %v1633 = vld [vmem:[%s5 + $0x38] sm:$0xff]
    %v1634 = vld [vmem:[%s5 + $0x40] sm:$0xff]
    %v1635 = vld [vmem:[%s5 + $0x48] sm:$0xff]
    %v1636 = vld [vmem:[%s5 + $0x50] sm:$0xff]
    %v1637 = vld [vmem:[%s5 + $0x58] sm:$0xff]
    %v1638 = vld [vmem:[%s5 + $0x60] sm:$0xff]
    %v1639 = vld [vmem:[%s5 + $0x68] sm:$0xff]
    %v1640 = vld [vmem:[%s5 + $0x70] sm:$0xff]
    %v1641 = vld [vmem:[%s5 + $0x78] sm:$0xff]
    %1642 = vmatprep.subr.mxu0 0.0
    %v1643 = vand.u32 %v1626, 4294901760
    %1644 = vmatpush1.msra.mxu0 %v1643
    %1645 = vmatprep.subr.mxu0 0.0
    %v1646 = vand.u32 %v1627, 4294901760
    %1647 = vmatpush1.msra.mxu0 %v1646
    %1648 = vmatprep.subr.mxu0 0.0
    %v1649 = vand.u32 %v1628, 4294901760
    %1650 = vmatpush1.msra.mxu0 %v1649
    %1651 = vmatprep.subr.mxu0 0.0
    %v1652 = vand.u32 %v1629, 4294901760
    %1653 = vmatpush1.msra.mxu0 %v1652
    %1654 = vmatprep.subr.mxu0 0.0
    %v1655 = vand.u32 %v1630, 4294901760
    %1656 = vmatpush1.msra.mxu0 %v1655
    %1657 = vmatprep.subr.mxu0 0.0
    %v1658 = vand.u32 %v1631, 4294901760
    %1659 = vmatpush1.msra.mxu0 %v1658
    %1660 = vmatprep.subr.mxu0 0.0
    %v1661 = vand.u32 %v1632, 4294901760
    %1662 = vmatpush1.msra.mxu0 %v1661
    %1663 = vmatprep.subr.mxu0 0.0
    %v1664 = vand.u32 %v1633, 4294901760
    %1665 = vmatpush1.msra.mxu0 %v1664
    %1666 = vmatprep.subr.mxu0 0.0
    %v1667 = vand.u32 %v1634, 4294901760
    %1668 = vmatpush1.msra.mxu0 %v1667
    %1669 = vmatprep.subr.mxu0 0.0
    %v1670 = vand.u32 %v1635, 4294901760
    %1671 = vmatpush1.msra.mxu0 %v1670
    %1672 = vmatprep.subr.mxu0 0.0
    %v1673 = vand.u32 %v1636, 4294901760
    %1674 = vmatpush1.msra.mxu0 %v1673
    %1675 = vmatprep.subr.mxu0 0.0
    %v1676 = vand.u32 %v1637, 4294901760
    %1677 = vmatpush1.msra.mxu0 %v1676
    %1678 = vmatprep.subr.mxu0 0.0
    %v1679 = vand.u32 %v1638, 4294901760
    %1680 = vmatpush1.msra.mxu0 %v1679
    %1681 = vmatprep.subr.mxu0 0.0
    %v1682 = vand.u32 %v1639, 4294901760
    %1683 = vmatpush1.msra.mxu0 %v1682
    %1684 = vmatprep.subr.mxu0 0.0
    %v1685 = vand.u32 %v1640, 4294901760
    %1686 = vmatpush1.msra.mxu0 %v1685
    %1687 = vmatprep.subr.mxu0 0.0
    %v1688 = vand.u32 %v1641, 4294901760
    %1689 = vmatpush1.msra.mxu0 %v1688
    %1690 = vmatprep.subr.mxu0 0.0
    %1691 = vmatpush1.msra.mxu0 0.0
    %1692 = vmatprep.subr.mxu0 0.0
    %1693 = vmatpush1.msra.mxu0 0.0
    %1694 = vmatprep.subr.mxu0 0.0
    %1695 = vmatpush1.msra.mxu0 0.0
    %1696 = vmatprep.subr.mxu0 0.0
    %1697 = vmatpush1.msra.mxu0 0.0
    %1698 = vmatprep.subr.mxu0 0.0
    %1699 = vmatpush1.msra.mxu0 0.0
    %1700 = vmatprep.subr.mxu0 0.0
    %1701 = vmatpush1.msra.mxu0 0.0
    %1702 = vmatprep.subr.mxu0 0.0
    %1703 = vmatpush1.msra.mxu0 0.0
    %1704 = vmatprep.subr.mxu0 0.0
    %1705 = vmatpush1.msra.mxu0 0.0
    %1706 = vmatprep.subr.mxu0 0.0
    %1707 = vmatpush1.msra.mxu0 0.0
    %1708 = vmatprep.subr.mxu0 0.0
    %1709 = vmatpush1.msra.mxu0 0.0
    %1710 = vmatprep.subr.mxu0 0.0
    %1711 = vmatpush1.msra.mxu0 0.0
    %1712 = vmatprep.subr.mxu0 0.0
    %1713 = vmatpush1.msra.mxu0 0.0
    %1714 = vmatprep.subr.mxu0 0.0
    %1715 = vmatpush1.msra.mxu0 0.0
    %1716 = vmatprep.subr.mxu0 0.0
    %1717 = vmatpush1.msra.mxu0 0.0
    %1718 = vmatprep.subr.mxu0 0.0
    %1719 = vmatpush1.msra.mxu0 0.0
    %1720 = vmatprep.subr.mxu0 0.0
    %1721 = vmatpush1.msra.mxu0 0.0
    %1722 = vmatprep.mubr.f32.mxu0 0.0
    %v1723 = vand.u32 %v1624, 4294901760
    %v1724 = vsub.f32 %v1624, %v1723
    %v1725 = vand.u32 %v1724, 4294901760
    %v1726 = vsub.f32 %v1724, %v1725
    %v1727 = vand.u32 %v1726, 4294901760
    %1728 = vmatmul.mubr.f32.gmra.mrb[0].mxu0 %v1727
    %v1729 = vpop.f32.mrb[0].mxu0
    %v1730 = vadd.f32 0.0, %v1729
    %v1731 = vpop.f32.mrb[0].mxu0
    %1732 = vmatprep.mubr.f32.mxu0 0.0
    %v1733 = vand.u32 %v1625, 4294901760
    %v1734 = vsub.f32 %v1625, %v1733
    %v1735 = vand.u32 %v1734, 4294901760
    %v1736 = vsub.f32 %v1734, %v1735
    %v1737 = vand.u32 %v1736, 4294901760
    %1738 = vmatmul.mubr.f32.gmra.mrb[0].mxu0 %v1737
    %v1739 = vpop.f32.mrb[0].mxu0
    %v1740 = vadd.f32 0.0, %v1739
    %v1741 = vpop.f32.mrb[0].mxu0
    %1742 = vdwg.mxu0
    %1743 = vmatprep.subr.mxu0 0.0
    %v1744 = vand.u32 %v1626, 4294901760
    %v1745 = vsub.f32 %v1626, %v1744
    %v1746 = vand.u32 %v1745, 4294901760
    %v1747 = vsub.f32 %v1745, %v1746
    %v1748 = vand.u32 %v1747, 4294901760
    %1749 = vmatpush1.msra.mxu0 %v1748
    %1750 = vmatprep.subr.mxu0 0.0
    %v1751 = vand.u32 %v1627, 4294901760
    %v1752 = vsub.f32 %v1627, %v1751
    %v1753 = vand.u32 %v1752, 4294901760
    %v1754 = vsub.f32 %v1752, %v1753
    %v1755 = vand.u32 %v1754, 4294901760
    %1756 = vmatpush1.msra.mxu0 %v1755
    %1757 = vmatprep.subr.mxu0 0.0
    %v1758 = vand.u32 %v1628, 4294901760
    %v1759 = vsub.f32 %v1628, %v1758
    %v1760 = vand.u32 %v1759, 4294901760
    %v1761 = vsub.f32 %v1759, %v1760
    %v1762 = vand.u32 %v1761, 4294901760
    %1763 = vmatpush1.msra.mxu0 %v1762
    %1764 = vmatprep.subr.mxu0 0.0
    %v1765 = vand.u32 %v1629, 4294901760
    %v1766 = vsub.f32 %v1629, %v1765
    %v1767 = vand.u32 %v1766, 4294901760
    %v1768 = vsub.f32 %v1766, %v1767
    %v1769 = vand.u32 %v1768, 4294901760
    %1770 = vmatpush1.msra.mxu0 %v1769
    %1771 = vmatprep.subr.mxu0 0.0
    %v1772 = vand.u32 %v1630, 4294901760
    %v1773 = vsub.f32 %v1630, %v1772
    %v1774 = vand.u32 %v1773, 4294901760
    %v1775 = vsub.f32 %v1773, %v1774
    %v1776 = vand.u32 %v1775, 4294901760
    %1777 = vmatpush1.msra.mxu0 %v1776
    %1778 = vmatprep.subr.mxu0 0.0
    %v1779 = vand.u32 %v1631, 4294901760
    %v1780 = vsub.f32 %v1631, %v1779
    %v1781 = vand.u32 %v1780, 4294901760
    %v1782 = vsub.f32 %v1780, %v1781
    %v1783 = vand.u32 %v1782, 4294901760
    %1784 = vmatpush1.msra.mxu0 %v1783
    %1785 = vmatprep.subr.mxu0 0.0
    %v1786 = vand.u32 %v1632, 4294901760
    %v1787 = vsub.f32 %v1632, %v1786
    %v1788 = vand.u32 %v1787, 4294901760
    %v1789 = vsub.f32 %v1787, %v1788
    %v1790 = vand.u32 %v1789, 4294901760
    %1791 = vmatpush1.msra.mxu0 %v1790
    %1792 = vmatprep.subr.mxu0 0.0
    %v1793 = vand.u32 %v1633, 4294901760
    %v1794 = vsub.f32 %v1633, %v1793
    %v1795 = vand.u32 %v1794, 4294901760
    %v1796 = vsub.f32 %v1794, %v1795
    %v1797 = vand.u32 %v1796, 4294901760
    %1798 = vmatpush1.msra.mxu0 %v1797
    %1799 = vmatprep.subr.mxu0 0.0
    %v1800 = vand.u32 %v1634, 4294901760
    %v1801 = vsub.f32 %v1634, %v1800
    %v1802 = vand.u32 %v1801, 4294901760
    %v1803 = vsub.f32 %v1801, %v1802
    %v1804 = vand.u32 %v1803, 4294901760
    %1805 = vmatpush1.msra.mxu0 %v1804
    %1806 = vmatprep.subr.mxu0 0.0
    %v1807 = vand.u32 %v1635, 4294901760
    %v1808 = vsub.f32 %v1635, %v1807
    %v1809 = vand.u32 %v1808, 4294901760
    %v1810 = vsub.f32 %v1808, %v1809
    %v1811 = vand.u32 %v1810, 4294901760
    %1812 = vmatpush1.msra.mxu0 %v1811
    %1813 = vmatprep.subr.mxu0 0.0
    %v1814 = vand.u32 %v1636, 4294901760
    %v1815 = vsub.f32 %v1636, %v1814
    %v1816 = vand.u32 %v1815, 4294901760
    %v1817 = vsub.f32 %v1815, %v1816
    %v1818 = vand.u32 %v1817, 4294901760
    %1819 = vmatpush1.msra.mxu0 %v1818
    %1820 = vmatprep.subr.mxu0 0.0
    %v1821 = vand.u32 %v1637, 4294901760
    %v1822 = vsub.f32 %v1637, %v1821
    %v1823 = vand.u32 %v1822, 4294901760
    %v1824 = vsub.f32 %v1822, %v1823
    %v1825 = vand.u32 %v1824, 4294901760
    %1826 = vmatpush1.msra.mxu0 %v1825
    %1827 = vmatprep.subr.mxu0 0.0
    %v1828 = vand.u32 %v1638, 4294901760
    %v1829 = vsub.f32 %v1638, %v1828
    %v1830 = vand.u32 %v1829, 4294901760
    %v1831 = vsub.f32 %v1829, %v1830
    %v1832 = vand.u32 %v1831, 4294901760
    %1833 = vmatpush1.msra.mxu0 %v1832
    %1834 = vmatprep.subr.mxu0 0.0
    %v1835 = vand.u32 %v1639, 4294901760
    %v1836 = vsub.f32 %v1639, %v1835
    %v1837 = vand.u32 %v1836, 4294901760
    %v1838 = vsub.f32 %v1836, %v1837
    %v1839 = vand.u32 %v1838, 4294901760
    %1840 = vmatpush1.msra.mxu0 %v1839
    %1841 = vmatprep.subr.mxu0 0.0
    %v1842 = vand.u32 %v1640, 4294901760
    %v1843 = vsub.f32 %v1640, %v1842
    %v1844 = vand.u32 %v1843, 4294901760
    %v1845 = vsub.f32 %v1843, %v1844
    %v1846 = vand.u32 %v1845, 4294901760
    %1847 = vmatpush1.msra.mxu0 %v1846
    %1848 = vmatprep.subr.mxu0 0.0
    %v1849 = vand.u32 %v1641, 4294901760
    %v1850 = vsub.f32 %v1641, %v1849
    %v1851 = vand.u32 %v1850, 4294901760
    %v1852 = vsub.f32 %v1850, %v1851
    %v1853 = vand.u32 %v1852, 4294901760
    %1854 = vmatpush1.msra.mxu0 %v1853
    %1855 = vmatprep.subr.mxu0 0.0
    %1856 = vmatpush1.msra.mxu0 0.0
    %1857 = vmatprep.subr.mxu0 0.0
    %1858 = vmatpush1.msra.mxu0 0.0
    %1859 = vmatprep.subr.mxu0 0.0
    %1860 = vmatpush1.msra.mxu0 0.0
    %1861 = vmatprep.subr.mxu0 0.0
    %1862 = vmatpush1.msra.mxu0 0.0
    %1863 = vmatprep.subr.mxu0 0.0
    %1864 = vmatpush1.msra.mxu0 0.0
    %1865 = vmatprep.subr.mxu0 0.0
    %1866 = vmatpush1.msra.mxu0 0.0
    %1867 = vmatprep.subr.mxu0 0.0
    %1868 = vmatpush1.msra.mxu0 0.0
    %1869 = vmatprep.subr.mxu0 0.0
    %1870 = vmatpush1.msra.mxu0 0.0
    %1871 = vmatprep.subr.mxu0 0.0
    %1872 = vmatpush1.msra.mxu0 0.0
    %1873 = vmatprep.subr.mxu0 0.0
    %1874 = vmatpush1.msra.mxu0 0.0
    %1875 = vmatprep.subr.mxu0 0.0
    %1876 = vmatpush1.msra.mxu0 0.0
    %1877 = vmatprep.subr.mxu0 0.0
    %1878 = vmatpush1.msra.mxu0 0.0
    %1879 = vmatprep.subr.mxu0 0.0
    %1880 = vmatpush1.msra.mxu0 0.0
    %1881 = vmatprep.subr.mxu0 0.0
    %1882 = vmatpush1.msra.mxu0 0.0
    %1883 = vmatprep.subr.mxu0 0.0
    %1884 = vmatpush1.msra.mxu0 0.0
    %1885 = vmatprep.subr.mxu0 0.0
    %1886 = vmatpush1.msra.mxu0 0.0
    %1887 = vmatprep.mubr.f32.mxu0 0.0
    %v1888 = vand.u32 %v1624, 4294901760
    %1889 = vmatmul.mubr.f32.gmra.mrb[0].mxu0 %v1888
    %v1890 = vpop.f32.mrb[0].mxu0
    %v1891 = vadd.f32 %v1730, %v1890
    %v1892 = vpop.f32.mrb[0].mxu0
    %1893 = vmatprep.mubr.f32.mxu0 0.0
    %v1894 = vand.u32 %v1625, 4294901760
    %1895 = vmatmul.mubr.f32.gmra.mrb[0].mxu0 %v1894
    %v1896 = vpop.f32.mrb[0].mxu0
    %v1897 = vadd.f32 %v1740, %v1896
    %v1898 = vpop.f32.mrb[0].mxu0
    %1899 = vdwg.mxu0
    %1900 = vmatprep.subr.mxu0 0.0
    %v1901 = vand.u32 %v1626, 4294901760
    %v1902 = vsub.f32 %v1626, %v1901
    %1903 = vmatpush1.msra.mxu0 %v1902
    %1904 = vmatprep.subr.mxu0 0.0
    %v1905 = vand.u32 %v1627, 4294901760
    %v1906 = vsub.f32 %v1627, %v1905
    %1907 = vmatpush1.msra.mxu0 %v1906
    %1908 = vmatprep.subr.mxu0 0.0
    %v1909 = vand.u32 %v1628, 4294901760
    %v1910 = vsub.f32 %v1628, %v1909
    %1911 = vmatpush1.msra.mxu0 %v1910
    %1912 = vmatprep.subr.mxu0 0.0
    %v1913 = vand.u32 %v1629, 4294901760
    %v1914 = vsub.f32 %v1629, %v1913
    %1915 = vmatpush1.msra.mxu0 %v1914
    %1916 = vmatprep.subr.mxu0 0.0
    %v1917 = vand.u32 %v1630, 4294901760
    %v1918 = vsub.f32 %v1630, %v1917
    %1919 = vmatpush1.msra.mxu0 %v1918
    %1920 = vmatprep.subr.mxu0 0.0
    %v1921 = vand.u32 %v1631, 4294901760
    %v1922 = vsub.f32 %v1631, %v1921
    %1923 = vmatpush1.msra.mxu0 %v1922
    %1924 = vmatprep.subr.mxu0 0.0
    %v1925 = vand.u32 %v1632, 4294901760
    %v1926 = vsub.f32 %v1632, %v1925
    %1927 = vmatpush1.msra.mxu0 %v1926
    %1928 = vmatprep.subr.mxu0 0.0
    %v1929 = vand.u32 %v1633, 4294901760
    %v1930 = vsub.f32 %v1633, %v1929
    %1931 = vmatpush1.msra.mxu0 %v1930
    %1932 = vmatprep.subr.mxu0 0.0
    %v1933 = vand.u32 %v1634, 4294901760
    %v1934 = vsub.f32 %v1634, %v1933
    %1935 = vmatpush1.msra.mxu0 %v1934
    %1936 = vmatprep.subr.mxu0 0.0
    %v1937 = vand.u32 %v1635, 4294901760
    %v1938 = vsub.f32 %v1635, %v1937
    %1939 = vmatpush1.msra.mxu0 %v1938
    %1940 = vmatprep.subr.mxu0 0.0
    %v1941 = vand.u32 %v1636, 4294901760
    %v1942 = vsub.f32 %v1636, %v1941
    %1943 = vmatpush1.msra.mxu0 %v1942
    %1944 = vmatprep.subr.mxu0 0.0
    %v1945 = vand.u32 %v1637, 4294901760
    %v1946 = vsub.f32 %v1637, %v1945
    %1947 = vmatpush1.msra.mxu0 %v1946
    %1948 = vmatprep.subr.mxu0 0.0
    %v1949 = vand.u32 %v1638, 4294901760
    %v1950 = vsub.f32 %v1638, %v1949
    %1951 = vmatpush1.msra.mxu0 %v1950
    %1952 = vmatprep.subr.mxu0 0.0
    %v1953 = vand.u32 %v1639, 4294901760
    %v1954 = vsub.f32 %v1639, %v1953
    %1955 = vmatpush1.msra.mxu0 %v1954
    %1956 = vmatprep.subr.mxu0 0.0
    %v1957 = vand.u32 %v1640, 4294901760
    %v1958 = vsub.f32 %v1640, %v1957
    %1959 = vmatpush1.msra.mxu0 %v1958
    %1960 = vmatprep.subr.mxu0 0.0
    %v1961 = vand.u32 %v1641, 4294901760
    %v1962 = vsub.f32 %v1641, %v1961
    %1963 = vmatpush1.msra.mxu0 %v1962
    %1964 = vmatprep.subr.mxu0 0.0
    %1965 = vmatpush1.msra.mxu0 0.0
    %1966 = vmatprep.subr.mxu0 0.0
    %1967 = vmatpush1.msra.mxu0 0.0
    %1968 = vmatprep.subr.mxu0 0.0
    %1969 = vmatpush1.msra.mxu0 0.0
    %1970 = vmatprep.subr.mxu0 0.0
    %1971 = vmatpush1.msra.mxu0 0.0
    %1972 = vmatprep.subr.mxu0 0.0
    %1973 = vmatpush1.msra.mxu0 0.0
    %1974 = vmatprep.subr.mxu0 0.0
    %1975 = vmatpush1.msra.mxu0 0.0
    %1976 = vmatprep.subr.mxu0 0.0
    %1977 = vmatpush1.msra.mxu0 0.0
    %1978 = vmatprep.subr.mxu0 0.0
    %1979 = vmatpush1.msra.mxu0 0.0
    %1980 = vmatprep.subr.mxu0 0.0
    %1981 = vmatpush1.msra.mxu0 0.0
    %1982 = vmatprep.subr.mxu0 0.0
    %1983 = vmatpush1.msra.mxu0 0.0
    %1984 = vmatprep.subr.mxu0 0.0
    %1985 = vmatpush1.msra.mxu0 0.0
    %1986 = vmatprep.subr.mxu0 0.0
    %1987 = vmatpush1.msra.mxu0 0.0
    %1988 = vmatprep.subr.mxu0 0.0
    %1989 = vmatpush1.msra.mxu0 0.0
    %1990 = vmatprep.subr.mxu0 0.0
    %1991 = vmatpush1.msra.mxu0 0.0
    %1992 = vmatprep.subr.mxu0 0.0
    %1993 = vmatpush1.msra.mxu0 0.0
    %1994 = vmatprep.subr.mxu0 0.0
    %1995 = vmatpush1.msra.mxu0 0.0
    %1996 = vmatprep.mubr.f32.mxu0 0.0
    %v1997 = vand.u32 %v1624, 4294901760
    %v1998 = vsub.f32 %v1624, %v1997
    %1999 = vmatmul.mubr.f32.gmra.mrb[0].mxu0 %v1998
    %v2000 = vpop.f32.mrb[0].mxu0
    %v2001 = vadd.f32 %v1891, %v2000
    %v2002 = vpop.f32.mrb[0].mxu0
    %2003 = vmatprep.mubr.f32.mxu0 0.0
    %v2004 = vand.u32 %v1625, 4294901760
    %v2005 = vsub.f32 %v1625, %v2004
    %2006 = vmatmul.mubr.f32.gmra.mrb[0].mxu0 %v2005
    %v2007 = vpop.f32.mrb[0].mxu0
    %v2008 = vadd.f32 %v1897, %v2007
    %v2009 = vpop.f32.mrb[0].mxu0
    %2010 = vdwg.mxu0
    %2011 = vmatprep.subr.mxu0 0.0
    %v2012 = vand.u32 %v1626, 4294901760
    %2013 = vmatpush1.msra.mxu0 %v2012
    %2014 = vmatprep.subr.mxu0 0.0
    %v2015 = vand.u32 %v1627, 4294901760
    %2016 = vmatpush1.msra.mxu0 %v2015
    %2017 = vmatprep.subr.mxu0 0.0
    %v2018 = vand.u32 %v1628, 4294901760
    %2019 = vmatpush1.msra.mxu0 %v2018
    %2020 = vmatprep.subr.mxu0 0.0
    %v2021 = vand.u32 %v1629, 4294901760
    %2022 = vmatpush1.msra.mxu0 %v2021
    %2023 = vmatprep.subr.mxu0 0.0
    %v2024 = vand.u32 %v1630, 4294901760
    %2025 = vmatpush1.msra.mxu0 %v2024
    %2026 = vmatprep.subr.mxu0 0.0
    %v2027 = vand.u32 %v1631, 4294901760
    %2028 = vmatpush1.msra.mxu0 %v2027
    %2029 = vmatprep.subr.mxu0 0.0
    %v2030 = vand.u32 %v1632, 4294901760
    %2031 = vmatpush1.msra.mxu0 %v2030
    %2032 = vmatprep.subr.mxu0 0.0
    %v2033 = vand.u32 %v1633, 4294901760
    %2034 = vmatpush1.msra.mxu0 %v2033
    %2035 = vmatprep.subr.mxu0 0.0
    %v2036 = vand.u32 %v1634, 4294901760
    %2037 = vmatpush1.msra.mxu0 %v2036
    %2038 = vmatprep.subr.mxu0 0.0
    %v2039 = vand.u32 %v1635, 4294901760
    %2040 = vmatpush1.msra.mxu0 %v2039
    %2041 = vmatprep.subr.mxu0 0.0
    %v2042 = vand.u32 %v1636, 4294901760
    %2043 = vmatpush1.msra.mxu0 %v2042
    %2044 = vmatprep.subr.mxu0 0.0
    %v2045 = vand.u32 %v1637, 4294901760
    %2046 = vmatpush1.msra.mxu0 %v2045
    %2047 = vmatprep.subr.mxu0 0.0
    %v2048 = vand.u32 %v1638, 4294901760
    %2049 = vmatpush1.msra.mxu0 %v2048
    %2050 = vmatprep.subr.mxu0 0.0
    %v2051 = vand.u32 %v1639, 4294901760
    %2052 = vmatpush1.msra.mxu0 %v2051
    %2053 = vmatprep.subr.mxu0 0.0
    %v2054 = vand.u32 %v1640, 4294901760
    %2055 = vmatpush1.msra.mxu0 %v2054
    %2056 = vmatprep.subr.mxu0 0.0
    %v2057 = vand.u32 %v1641, 4294901760
    %2058 = vmatpush1.msra.mxu0 %v2057
    %2059 = vmatprep.subr.mxu0 0.0
    %2060 = vmatpush1.msra.mxu0 0.0
    %2061 = vmatprep.subr.mxu0 0.0
    %2062 = vmatpush1.msra.mxu0 0.0
    %2063 = vmatprep.subr.mxu0 0.0
    %2064 = vmatpush1.msra.mxu0 0.0
    %2065 = vmatprep.subr.mxu0 0.0
    %2066 = vmatpush1.msra.mxu0 0.0
    %2067 = vmatprep.subr.mxu0 0.0
    %2068 = vmatpush1.msra.mxu0 0.0
    %2069 = vmatprep.subr.mxu0 0.0
    %2070 = vmatpush1.msra.mxu0 0.0
    %2071 = vmatprep.subr.mxu0 0.0
    %2072 = vmatpush1.msra.mxu0 0.0
    %2073 = vmatprep.subr.mxu0 0.0
    %2074 = vmatpush1.msra.mxu0 0.0
    %2075 = vmatprep.subr.mxu0 0.0
    %2076 = vmatpush1.msra.mxu0 0.0
    %2077 = vmatprep.subr.mxu0 0.0
    %2078 = vmatpush1.msra.mxu0 0.0
    %2079 = vmatprep.subr.mxu0 0.0
    %2080 = vmatpush1.msra.mxu0 0.0
    %2081 = vmatprep.subr.mxu0 0.0
    %2082 = vmatpush1.msra.mxu0 0.0
    %2083 = vmatprep.subr.mxu0 0.0
    %2084 = vmatpush1.msra.mxu0 0.0
    %2085 = vmatprep.subr.mxu0 0.0
    %2086 = vmatpush1.msra.mxu0 0.0
    %2087 = vmatprep.subr.mxu0 0.0
    %2088 = vmatpush1.msra.mxu0 0.0
    %2089 = vmatprep.subr.mxu0 0.0
    %2090 = vmatpush1.msra.mxu0 0.0
    %2091 = vmatprep.mubr.f32.mxu0 0.0
    %v2092 = vand.u32 %v1624, 4294901760
    %v2093 = vsub.f32 %v1624, %v2092
    %v2094 = vand.u32 %v2093, 4294901760
    %2095 = vmatmul.mubr.f32.gmra.mrb[0].mxu0 %v2094
    %v2096 = vpop.f32.mrb[0].mxu0
    %v2097 = vadd.f32 %v2001, %v2096
    %v2098 = vpop.f32.mrb[0].mxu0
    %2099 = vmatprep.mubr.f32.mxu0 0.0
    %v2100 = vand.u32 %v1625, 4294901760
    %v2101 = vsub.f32 %v1625, %v2100
    %v2102 = vand.u32 %v2101, 4294901760
    %2103 = vmatmul.mubr.f32.gmra.mrb[0].mxu0 %v2102
    %v2104 = vpop.f32.mrb[0].mxu0
    %v2105 = vadd.f32 %v2008, %v2104
    %v2106 = vpop.f32.mrb[0].mxu0
    %2107 = vdwg.mxu0
    %2108 = vmatprep.subr.mxu0 0.0
    %v2109 = vand.u32 %v1626, 4294901760
    %v2110 = vsub.f32 %v1626, %v2109
    %v2111 = vand.u32 %v2110, 4294901760
    %2112 = vmatpush1.msra.mxu0 %v2111
    %2113 = vmatprep.subr.mxu0 0.0
    %v2114 = vand.u32 %v1627, 4294901760
    %v2115 = vsub.f32 %v1627, %v2114
    %v2116 = vand.u32 %v2115, 4294901760
    %2117 = vmatpush1.msra.mxu0 %v2116
    %2118 = vmatprep.subr.mxu0 0.0
    %v2119 = vand.u32 %v1628, 4294901760
    %v2120 = vsub.f32 %v1628, %v2119
    %v2121 = vand.u32 %v2120, 4294901760
    %2122 = vmatpush1.msra.mxu0 %v2121
    %2123 = vmatprep.subr.mxu0 0.0
    %v2124 = vand.u32 %v1629, 4294901760
    %v2125 = vsub.f32 %v1629, %v2124
    %v2126 = vand.u32 %v2125, 4294901760
    %2127 = vmatpush1.msra.mxu0 %v2126
    %2128 = vmatprep.subr.mxu0 0.0
    %v2129 = vand.u32 %v1630, 4294901760
    %v2130 = vsub.f32 %v1630, %v2129
    %v2131 = vand.u32 %v2130, 4294901760
    %2132 = vmatpush1.msra.mxu0 %v2131
    %2133 = vmatprep.subr.mxu0 0.0
    %v2134 = vand.u32 %v1631, 4294901760
    %v2135 = vsub.f32 %v1631, %v2134
    %v2136 = vand.u32 %v2135, 4294901760
    %2137 = vmatpush1.msra.mxu0 %v2136
    %2138 = vmatprep.subr.mxu0 0.0
    %v2139 = vand.u32 %v1632, 4294901760
    %v2140 = vsub.f32 %v1632, %v2139
    %v2141 = vand.u32 %v2140, 4294901760
    %2142 = vmatpush1.msra.mxu0 %v2141
    %2143 = vmatprep.subr.mxu0 0.0
    %v2144 = vand.u32 %v1633, 4294901760
    %v2145 = vsub.f32 %v1633, %v2144
    %v2146 = vand.u32 %v2145, 4294901760
    %2147 = vmatpush1.msra.mxu0 %v2146
    %2148 = vmatprep.subr.mxu0 0.0
    %v2149 = vand.u32 %v1634, 4294901760
    %v2150 = vsub.f32 %v1634, %v2149
    %v2151 = vand.u32 %v2150, 4294901760
    %2152 = vmatpush1.msra.mxu0 %v2151
    %2153 = vmatprep.subr.mxu0 0.0
    %v2154 = vand.u32 %v1635, 4294901760
    %v2155 = vsub.f32 %v1635, %v2154
    %v2156 = vand.u32 %v2155, 4294901760
    %2157 = vmatpush1.msra.mxu0 %v2156
    %2158 = vmatprep.subr.mxu0 0.0
    %v2159 = vand.u32 %v1636, 4294901760
    %v2160 = vsub.f32 %v1636, %v2159
    %v2161 = vand.u32 %v2160, 4294901760
    %2162 = vmatpush1.msra.mxu0 %v2161
    %2163 = vmatprep.subr.mxu0 0.0
    %v2164 = vand.u32 %v1637, 4294901760
    %v2165 = vsub.f32 %v1637, %v2164
    %v2166 = vand.u32 %v2165, 4294901760
    %2167 = vmatpush1.msra.mxu0 %v2166
    %2168 = vmatprep.subr.mxu0 0.0
    %v2169 = vand.u32 %v1638, 4294901760
    %v2170 = vsub.f32 %v1638, %v2169
    %v2171 = vand.u32 %v2170, 4294901760
    %2172 = vmatpush1.msra.mxu0 %v2171
    %2173 = vmatprep.subr.mxu0 0.0
    %v2174 = vand.u32 %v1639, 4294901760
    %v2175 = vsub.f32 %v1639, %v2174
    %v2176 = vand.u32 %v2175, 4294901760
    %2177 = vmatpush1.msra.mxu0 %v2176
    %2178 = vmatprep.subr.mxu0 0.0
    %v2179 = vand.u32 %v1640, 4294901760
    %v2180 = vsub.f32 %v1640, %v2179
    %v2181 = vand.u32 %v2180, 4294901760
    %2182 = vmatpush1.msra.mxu0 %v2181
    %2183 = vmatprep.subr.mxu0 0.0
    %v2184 = vand.u32 %v1641, 4294901760
    %v2185 = vsub.f32 %v1641, %v2184
    %v2186 = vand.u32 %v2185, 4294901760
    %2187 = vmatpush1.msra.mxu0 %v2186
    %2188 = vmatprep.subr.mxu0 0.0
    %2189 = vmatpush1.msra.mxu0 0.0
    %2190 = vmatprep.subr.mxu0 0.0
    %2191 = vmatpush1.msra.mxu0 0.0
    %2192 = vmatprep.subr.mxu0 0.0
    %2193 = vmatpush1.msra.mxu0 0.0
    %2194 = vmatprep.subr.mxu0 0.0
    %2195 = vmatpush1.msra.mxu0 0.0
    %2196 = vmatprep.subr.mxu0 0.0
    %2197 = vmatpush1.msra.mxu0 0.0
    %2198 = vmatprep.subr.mxu0 0.0
    %2199 = vmatpush1.msra.mxu0 0.0
    %2200 = vmatprep.subr.mxu0 0.0
    %2201 = vmatpush1.msra.mxu0 0.0
    %2202 = vmatprep.subr.mxu0 0.0
    %2203 = vmatpush1.msra.mxu0 0.0
    %2204 = vmatprep.subr.mxu0 0.0
    %2205 = vmatpush1.msra.mxu0 0.0
    %2206 = vmatprep.subr.mxu0 0.0
    %2207 = vmatpush1.msra.mxu0 0.0
    %2208 = vmatprep.subr.mxu0 0.0
    %2209 = vmatpush1.msra.mxu0 0.0
    %2210 = vmatprep.subr.mxu0 0.0
    %2211 = vmatpush1.msra.mxu0 0.0
    %2212 = vmatprep.subr.mxu0 0.0
    %2213 = vmatpush1.msra.mxu0 0.0
    %2214 = vmatprep.subr.mxu0 0.0
    %2215 = vmatpush1.msra.mxu0 0.0
    %2216 = vmatprep.subr.mxu0 0.0
    %2217 = vmatpush1.msra.mxu0 0.0
    %2218 = vmatprep.subr.mxu0 0.0
    %2219 = vmatpush1.msra.mxu0 0.0
    %2220 = vmatprep.mubr.f32.mxu0 0.0
    %v2221 = vand.u32 %v1624, 4294901760
    %2222 = vmatmul.mubr.f32.gmra.mrb[0].mxu0 %v2221
    %v2223 = vpop.f32.mrb[0].mxu0
    %v2224 = vadd.f32 %v2097, %v2223
    %v2225 = vpop.f32.mrb[0].mxu0
    %2226 = vmatprep.mubr.f32.mxu0 0.0
    %v2227 = vand.u32 %v1625, 4294901760
    %2228 = vmatmul.mubr.f32.gmra.mrb[0].mxu0 %v2227
    %v2229 = vpop.f32.mrb[0].mxu0
    %v2230 = vadd.f32 %v2105, %v2229
    %v2231 = vpop.f32.mrb[0].mxu0
    %2232 = vdwg.mxu0
    %2233 = vmatprep.subr.mxu0 0.0
    %v2234 = vand.u32 %v1626, 4294901760
    %2235 = vmatpush1.msra.mxu0 %v2234
    %2236 = vmatprep.subr.mxu0 0.0
    %v2237 = vand.u32 %v1627, 4294901760
    %2238 = vmatpush1.msra.mxu0 %v2237
    %2239 = vmatprep.subr.mxu0 0.0
    %v2240 = vand.u32 %v1628, 4294901760
    %2241 = vmatpush1.msra.mxu0 %v2240
    %2242 = vmatprep.subr.mxu0 0.0
    %v2243 = vand.u32 %v1629, 4294901760
    %2244 = vmatpush1.msra.mxu0 %v2243
    %2245 = vmatprep.subr.mxu0 0.0
    %v2246 = vand.u32 %v1630, 4294901760
    %2247 = vmatpush1.msra.mxu0 %v2246
    %2248 = vmatprep.subr.mxu0 0.0
    %v2249 = vand.u32 %v1631, 4294901760
    %2250 = vmatpush1.msra.mxu0 %v2249
    %2251 = vmatprep.subr.mxu0 0.0
    %v2252 = vand.u32 %v1632, 4294901760
    %2253 = vmatpush1.msra.mxu0 %v2252
    %2254 = vmatprep.subr.mxu0 0.0
    %v2255 = vand.u32 %v1633, 4294901760
    %2256 = vmatpush1.msra.mxu0 %v2255
    %2257 = vmatprep.subr.mxu0 0.0
    %v2258 = vand.u32 %v1634, 4294901760
    %2259 = vmatpush1.msra.mxu0 %v2258
    %2260 = vmatprep.subr.mxu0 0.0
    %v2261 = vand.u32 %v1635, 4294901760
    %2262 = vmatpush1.msra.mxu0 %v2261
    %2263 = vmatprep.subr.mxu0 0.0
    %v2264 = vand.u32 %v1636, 4294901760
    %2265 = vmatpush1.msra.mxu0 %v2264
    %2266 = vmatprep.subr.mxu0 0.0
    %v2267 = vand.u32 %v1637, 4294901760
    %2268 = vmatpush1.msra.mxu0 %v2267
    %2269 = vmatprep.subr.mxu0 0.0
    %v2270 = vand.u32 %v1638, 4294901760
    %2271 = vmatpush1.msra.mxu0 %v2270
    %2272 = vmatprep.subr.mxu0 0.0
    %v2273 = vand.u32 %v1639, 4294901760
    %2274 = vmatpush1.msra.mxu0 %v2273
    %2275 = vmatprep.subr.mxu0 0.0
    %v2276 = vand.u32 %v1640, 4294901760
    %2277 = vmatpush1.msra.mxu0 %v2276
    %2278 = vmatprep.subr.mxu0 0.0
    %v2279 = vand.u32 %v1641, 4294901760
    %2280 = vmatpush1.msra.mxu0 %v2279
    %2281 = vmatprep.subr.mxu0 0.0
    %2282 = vmatpush1.msra.mxu0 0.0
    %2283 = vmatprep.subr.mxu0 0.0
    %2284 = vmatpush1.msra.mxu0 0.0
    %2285 = vmatprep.subr.mxu0 0.0
    %2286 = vmatpush1.msra.mxu0 0.0
    %2287 = vmatprep.subr.mxu0 0.0
    %2288 = vmatpush1.msra.mxu0 0.0
    %2289 = vmatprep.subr.mxu0 0.0
    %2290 = vmatpush1.msra.mxu0 0.0
    %2291 = vmatprep.subr.mxu0 0.0
    %2292 = vmatpush1.msra.mxu0 0.0
    %2293 = vmatprep.subr.mxu0 0.0
    %2294 = vmatpush1.msra.mxu0 0.0
    %2295 = vmatprep.subr.mxu0 0.0
    %2296 = vmatpush1.msra.mxu0 0.0
    %2297 = vmatprep.subr.mxu0 0.0
    %2298 = vmatpush1.msra.mxu0 0.0
    %2299 = vmatprep.subr.mxu0 0.0
    %2300 = vmatpush1.msra.mxu0 0.0
    %2301 = vmatprep.subr.mxu0 0.0
    %2302 = vmatpush1.msra.mxu0 0.0
    %2303 = vmatprep.subr.mxu0 0.0
    %2304 = vmatpush1.msra.mxu0 0.0
    %2305 = vmatprep.subr.mxu0 0.0
    %2306 = vmatpush1.msra.mxu0 0.0
    %2307 = vmatprep.subr.mxu0 0.0
    %2308 = vmatpush1.msra.mxu0 0.0
    %2309 = vmatprep.subr.mxu0 0.0
    %2310 = vmatpush1.msra.mxu0 0.0
    %2311 = vmatprep.subr.mxu0 0.0
    %2312 = vmatpush1.msra.mxu0 0.0
    %2313 = vmatprep.mubr.f32.mxu0 0.0
    %v2314 = vand.u32 %v1624, 4294901760
    %2315 = vmatmul.mubr.f32.gmra.mrb[0].mxu0 %v2314
    %v2316 = vpop.f32.mrb[0].mxu0
    %v2317 = vadd.f32 %v2224, %v2316
    %v2318 = vpop.f32.mrb[0].mxu0
    %2319 = vmatprep.mubr.f32.mxu0 0.0
    %v2320 = vand.u32 %v1625, 4294901760
    %2321 = vmatmul.mubr.f32.gmra.mrb[0].mxu0 %v2320
    %v2322 = vpop.f32.mrb[0].mxu0
    %v2323 = vadd.f32 %v2230, %v2322
    %v2324 = vpop.f32.mrb[0].mxu0
    %2325 = vdwg.mxu0
    %2326 = vst.msk [vmem:[#allocation2] sm:$0xff] %vm30, %v2317
    %2327 = vst.msk [vmem:[#allocation2 + $0x8] sm:$0xff] %vm30, %v2323
    // Predicated region
    $region26: #{tpu_custom_call.1} parent=1 // pred_check
      _
    $region27: #{tpu_custom_call.1} parent=1 // pred_check_branch
      %2329 = sbr.rel (0) target = $region29
    $region28: #{tpu_custom_call.1} parent=1 // pred_region
      %s2331 = ssub.s32 256, 256
      %2332 = vsyncadd [#allocation3], %s2331
      %s2333 = sshll.u32 [#allocation2], 4
      %s2334 = int_to_ptr.vmem [resolvable:$true] %s2333
      %2339 = dma.vmem_to_hbm [thread:$0]  %s2334, 256, %s6, [#allocation3], 128, 128, 8
    $region29: #{tpu_custom_call.1} parent=1 // pred_fallthru
      _
    // Predicated region
    $region30: #{tpu_custom_call.1} parent=1 // pred_check
      _
    $region31: #{tpu_custom_call.1} parent=1 // pred_check_branch
      %2341 = sbr.rel (0) target = $region33
    $region32: #{tpu_custom_call.1} parent=1 // pred_region
      %2342 = dma.done [#allocation3], 256
    $region33: #{tpu_custom_call.1} parent=1 // pred_fallthru
      _
    %2343 = vsyncpa [#allocation3], 1

</llo_original>
